<compile_context>
chip_gen: v5e
topology: v5e:2x2
jax: 0.10.0
libtpu: 0.0.40
codegen_flags: <defaults>
</compile_context>

<pallas_src>
import jax
import jax.numpy as jnp
from jax.experimental import pallas as pl
from jax.experimental.pallas import tpu as pltpu

HIDDEN = 1024
NUM_CLASSES = 6
LANE = 128


def _round_up(n, m):
    return ((n + m - 1) // m) * m


def head_kernel(x_ref, w1_ref, b1_ref, w2_ref, b2_ref, o_ref, acc_ref):
    """Grid = (row_tiles, k_steps).  acc_ref accumulates x @ w1 in f32."""
    k = pl.program_id(1)

    @pl.when(k == 0)
    def _():
        acc_ref[...] = jnp.zeros_like(acc_ref)

    # In-kernel f32 -> bf16 cast of the activation tile (hidden under the MXU).
    x = x_ref[...].astype(jnp.bfloat16)
    acc_ref[...] += jnp.dot(x, w1_ref[...],
                            preferred_element_type=jnp.float32)   # MXU, f32 acc

    @pl.when(k == pl.num_programs(1) - 1)
    def _():
        h = jnp.tanh(acc_ref[...] + b1_ref[...])                  # f32 epilogue
        out = jnp.dot(h.astype(w2_ref.dtype), w2_ref[...],
                      preferred_element_type=jnp.float32)         # MXU, f32 acc
        o_ref[...] = (out + b2_ref[...]).astype(o_ref.dtype)


def prepare_params(w1, b1, w2, b2):
    """One-time parameter conversion (call at init, NOT per forward).

    Weights are stored as (in_features, out_features), i.e. PyTorch W.T.
    Returns (w1_bf16, b1_f32[1,1024], w2_bf16 padded to 128 classes, b2_f32[1,128]).
    """
    H, C = w2.shape
    assert H == HIDDEN and w1.shape == (HIDDEN, HIDDEN)
    c_pad = _round_up(C, LANE)                    # lane-dense output stores
    w1_bf = w1.astype(jnp.bfloat16)
    w2_bf = jnp.pad(w2, ((0, 0), (0, c_pad - C))).astype(jnp.bfloat16)
    b1_2d = b1.reshape(1, HIDDEN).astype(jnp.float32)
    b2_2d = jnp.pad(b2, (0, c_pad - C)).reshape(1, c_pad).astype(jnp.float32)
    return w1_bf, b1_2d, w2_bf, b2_2d


def unispeech_classification_head(x, params, *, num_classes=NUM_CLASSES,
                                  bm=None, tk=None):
    """x: (B, 1024) f32; params from prepare_params().  Returns (B, num_classes) f32."""
    w1_bf, b1_2d, w2_bf, b2_2d = params
    B, H = x.shape
    assert H == HIDDEN
    c_pad = w2_bf.shape[1]

    # Row tiling: a single row tile (padded only to a multiple of 8) covers
    # B <= 1024; larger batches use 1024-row tiles.
    if bm is None:
        bm = _round_up(max(B, 1), 8) if B <= 1024 else 1024
    B_pad = _round_up(B, bm)
    rows = B_pad // bm

    # K tiling: split the reduction when there is a single row tile so the w1
    # DMA overlaps MXU work; otherwise keep w1 resident (fetched exactly once).
    if tk is None:
        tk = 256 if rows == 1 else HIDDEN
    ksteps = HIDDEN // tk

    x_p = jnp.pad(x, ((0, B_pad - B), (0, 0))) if B_pad != B else x

    out = pl.pallas_call(
        head_kernel,
        out_shape=jax.ShapeDtypeStruct((B_pad, c_pad), jnp.float32),
        grid_spec=pltpu.PrefetchScalarGridSpec(
            num_scalar_prefetch=0,
            grid=(rows, ksteps),
            in_specs=[
                pl.BlockSpec((bm, tk), lambda i, k: (i, k)),         # x tile (f32)
                pl.BlockSpec((tk, HIDDEN), lambda i, k: (k, 0)),     # dense W (bf16)
                pl.BlockSpec((1, HIDDEN), lambda i, k: (0, 0)),      # dense bias (f32)
                pl.BlockSpec((HIDDEN, c_pad), lambda i, k: (0, 0)),  # out_proj W (bf16)
                pl.BlockSpec((1, c_pad), lambda i, k: (0, 0)),       # out_proj bias (f32)
            ],
            out_specs=pl.BlockSpec((bm, c_pad), lambda i, k: (i, 0)),
            scratch_shapes=[pltpu.VMEM((bm, HIDDEN), jnp.float32)],  # f32 accumulator
        ),
        compiler_params=pltpu.CompilerParams(
            # Shard rows across TensorCores only when there is real row
            # parallelism; the K axis is a reduction -> "arbitrary".
            dimension_semantics=(
                ("parallel" if rows > 1 else "arbitrary"), "arbitrary"),
            vmem_limit_bytes=32 * 1024 * 1024,
        ),
    )(x_p, w1_bf, b1_2d, w2_bf, b2_2d)

    return out[:B, :num_classes]


if __name__ == "__main__":
    key = jax.random.PRNGKey(0)
    kx, kw1, kb1, kw2, kb2 = jax.random.split(key, 5)

    B = 16  # small batch; single row step padded to a multiple of 8
    x = jax.random.normal(kx, (B, HIDDEN), dtype=jnp.float32)

    # Deterministic synthetic parameters (nn.Linear(1024,1024) / nn.Linear(1024,6)).
    scale = 1.0 / jnp.sqrt(HIDDEN)
    w1 = jax.random.uniform(kw1, (HIDDEN, HIDDEN), jnp.float32, -scale, scale)
    b1 = jax.random.uniform(kb1, (HIDDEN,), jnp.float32, -scale, scale)
    w2 = jax.random.uniform(kw2, (HIDDEN, NUM_CLASSES), jnp.float32, -scale, scale)
    b2 = jax.random.uniform(kb2, (NUM_CLASSES,), jnp.float32, -scale, scale)

    # One-time weight preparation, hoisted out of the forward / hot loop.
    params = jax.block_until_ready(prepare_params(w1, b1, w2, b2))

    fwd = jax.jit(unispeech_classification_head,
                  static_argnames=("num_classes", "bm", "tk"))
    out = jax.block_until_ready(fwd(x, params))
    assert out.shape == (B, NUM_CLASSES)

    # Loose check vs. the pure-f32 reference (bf16 operand rounding shifts results).
    ref32 = jnp.tanh(x @ w1 + b1) @ w2 + b2
    assert jnp.allclose(out, ref32, atol=3e-2, rtol=3e-2), "mismatch vs f32 reference"

    # Tight check vs. a reference with the same bf16 operand rounding + f32 accumulation.
    xb, w1b, w2b = (a.astype(jnp.bfloat16) for a in (x, w1, w2))
    h = jnp.tanh(jnp.dot(xb, w1b, preferred_element_type=jnp.float32) + b1)
    ref_bf = jnp.dot(h.astype(jnp.bfloat16), w2b, preferred_element_type=jnp.float32) + b2
    assert jnp.allclose(out, ref_bf, atol=2e-3, rtol=2e-3), "mismatch vs bf16 reference"

    print("KERNEL_OK")
</pallas_src>

<mosaic_0001>
module attributes {stable_mosaic.version = 11 : i64} {
  func.func @head_kernel(%arg0: i32, %arg1: i32, %arg2: memref<16x256xf32, #tpu.memory_space<vmem>>, %arg3: memref<256x1024xbf16, #tpu.memory_space<vmem>>, %arg4: memref<1x1024xf32, #tpu.memory_space<vmem>>, %arg5: memref<1024x128xbf16, #tpu.memory_space<vmem>>, %arg6: memref<1x128xf32, #tpu.memory_space<vmem>>, %arg7: memref<16x128xf32, #tpu.memory_space<vmem>>, %arg8: memref<16x1024xf32, #tpu.memory_space<vmem>>) attributes {dimension_semantics = [#tpu.dimension_semantics<arbitrary>, #tpu.dimension_semantics<arbitrary>], iteration_bounds = array<i64: 1, 4>, scalar_prefetch = 0 : i64, scratch_operands = 1 : i64, tpu.core_type = #tpu.core_type<tc>, window_params = [{transform_indices = @transform_0, window_bounds = array<i64: 16, 256>}, {transform_indices = @transform_1, window_bounds = array<i64: 256, 1024>}, {pipeline_mode = #tpu.pipeline_mode<synchronous>, transform_indices = @transform_2, window_bounds = array<i64: 1, 1024>}, {pipeline_mode = #tpu.pipeline_mode<synchronous>, transform_indices = @transform_3, window_bounds = array<i64: 1024, 128>}, {pipeline_mode = #tpu.pipeline_mode<synchronous>, transform_indices = @transform_4, window_bounds = array<i64: 1, 128>}, {transform_indices = @transform_5, window_bounds = array<i64: 16, 128>}]} {
    %c0_i32 = arith.constant 0 : i32
    %0 = arith.cmpi eq, %arg1, %c0_i32 : i32
    %1 = arith.extui %0 : i1 to i32
    %c0_i32_0 = arith.constant 0 : i32
    %2 = arith.cmpi ne, %1, %c0_i32_0 : i32
    scf.if %2 {
      %cst_9 = arith.constant 0.000000e+00 : f32
      %13 = vector.broadcast %cst_9 : f32 to vector<16x1024xf32>
      %c0_10 = arith.constant 0 : index
      %c0_11 = arith.constant 0 : index
      %14 = vector.load %arg8[%c0_10, %c0_11] : memref<16x1024xf32, #tpu.memory_space<vmem>>, vector<16x1024xf32>
      tpu.vector_store %arg8[%c0_10, %c0_11], %13 {strides = array<i32>} : memref<16x1024xf32, #tpu.memory_space<vmem>>, vector<16x1024xf32>,
    } else {
    }
    %c0 = arith.constant 0 : index
    %c0_1 = arith.constant 0 : index
    %3 = vector.load %arg2[%c0, %c0_1] : memref<16x256xf32, #tpu.memory_space<vmem>>, vector<16x256xf32>
    %4 = arith.truncf %3 : vector<16x256xf32> to vector<16x256xbf16>
    %c0_2 = arith.constant 0 : index
    %c0_3 = arith.constant 0 : index
    %5 = vector.load %arg8[%c0_2, %c0_3] : memref<16x1024xf32, #tpu.memory_space<vmem>>, vector<16x1024xf32>
    %c0_4 = arith.constant 0 : index
    %c0_5 = arith.constant 0 : index
    %6 = vector.load %arg3[%c0_4, %c0_5] : memref<256x1024xbf16, #tpu.memory_space<vmem>>, vector<256x1024xbf16>
    %cst = arith.constant dense<0.000000e+00> : vector<16x1024xf32>
    %7 = tpu.matmul %4, %6, %cst {dimension_numbers = #tpu.dot_dimension_numbers<[1], [0], [0], [1], [0, 0, 1, 1], [], []>} : vector<16x256xbf16>, vector<256x1024xbf16>, vector<16x1024xf32> -> vector<16x1024xf32>
    %8 = arith.addf %5, %7 : vector<16x1024xf32>
    %c0_6 = arith.constant 0 : index
    %c0_7 = arith.constant 0 : index
    %9 = vector.load %arg8[%c0_6, %c0_7] : memref<16x1024xf32, #tpu.memory_space<vmem>>, vector<16x1024xf32>
    tpu.vector_store %arg8[%c0_6, %c0_7], %8 {strides = array<i32>} : memref<16x1024xf32, #tpu.memory_space<vmem>>, vector<16x1024xf32>,
    %c3_i32 = arith.constant 3 : i32
    %10 = arith.cmpi eq, %arg1, %c3_i32 : i32
    %11 = arith.extui %10 : i1 to i32
    %c0_i32_8 = arith.constant 0 : i32
    %12 = arith.cmpi ne, %11, %c0_i32_8 : i32
    scf.if %12 {
      %c0_9 = arith.constant 0 : index
      %c0_10 = arith.constant 0 : index
      %13 = vector.load %arg8[%c0_9, %c0_10] : memref<16x1024xf32, #tpu.memory_space<vmem>>, vector<16x1024xf32>
      %c0_11 = arith.constant 0 : index
      %c0_12 = arith.constant 0 : index
      %14 = vector.load %arg4[%c0_11, %c0_12] : memref<1x1024xf32, #tpu.memory_space<vmem>>, vector<1x1024xf32>
      %15 = vector.broadcast %14 : vector<1x1024xf32> to vector<16x1024xf32>
      %16 = arith.addf %13, %15 : vector<16x1024xf32>
      %17 = math.tanh %16 : vector<16x1024xf32>
      %18 = arith.truncf %17 : vector<16x1024xf32> to vector<16x1024xbf16>
      %c0_13 = arith.constant 0 : index
      %c0_14 = arith.constant 0 : index
      %19 = vector.load %arg5[%c0_13, %c0_14] : memref<1024x128xbf16, #tpu.memory_space<vmem>>, vector<1024x128xbf16>
      %cst_15 = arith.constant dense<0.000000e+00> : vector<16x128xf32>
      %20 = tpu.matmul %18, %19, %cst_15 {dimension_numbers = #tpu.dot_dimension_numbers<[1], [0], [0], [1], [0, 0, 1, 1], [], []>} : vector<16x1024xbf16>, vector<1024x128xbf16>, vector<16x128xf32> -> vector<16x128xf32>
      %c0_16 = arith.constant 0 : index
      %c0_17 = arith.constant 0 : index
      %21 = vector.load %arg6[%c0_16, %c0_17] : memref<1x128xf32, #tpu.memory_space<vmem>>, vector<1x128xf32>
      %22 = vector.broadcast %21 : vector<1x128xf32> to vector<16x128xf32>
      %23 = arith.addf %20, %22 : vector<16x128xf32>
      %c0_18 = arith.constant 0 : index
      %c0_19 = arith.constant 0 : index
      %24 = vector.load %arg7[%c0_18, %c0_19] : memref<16x128xf32, #tpu.memory_space<vmem>>, vector<16x128xf32>
      tpu.vector_store %arg7[%c0_18, %c0_19], %23 {strides = array<i32>} : memref<16x128xf32, #tpu.memory_space<vmem>>, vector<16x128xf32>,
    } else {
    }
    return
  }
  func.func @transform_0(%arg0: i32, %arg1: i32) -> (i32, i32) {
    %c0_i32 = arith.constant 0 : i32
    return %arg0, %arg1 : i32, i32
  }
  func.func @transform_1(%arg0: i32, %arg1: i32) -> (i32, i32) {
    %c0_i32 = arith.constant 0 : i32
    %c0_i32_0 = arith.constant 0 : i32
    return %arg1, %c0_i32 : i32, i32
  }
  func.func @transform_2(%arg0: i32, %arg1: i32) -> (i32, i32) {
    %c0_i32 = arith.constant 0 : i32
    %c0_i32_0 = arith.constant 0 : i32
    %c0_i32_1 = arith.constant 0 : i32
    return %c0_i32, %c0_i32_0 : i32, i32
  }
  func.func @transform_3(%arg0: i32, %arg1: i32) -> (i32, i32) {
    %c0_i32 = arith.constant 0 : i32
    %c0_i32_0 = arith.constant 0 : i32
    %c0_i32_1 = arith.constant 0 : i32
    return %c0_i32, %c0_i32_0 : i32, i32
  }
  func.func @transform_4(%arg0: i32, %arg1: i32) -> (i32, i32) {
    %c0_i32 = arith.constant 0 : i32
    %c0_i32_0 = arith.constant 0 : i32
    %c0_i32_1 = arith.constant 0 : i32
    return %c0_i32, %c0_i32_0 : i32, i32
  }
  func.func @transform_5(%arg0: i32, %arg1: i32) -> (i32, i32) {
    %c0_i32 = arith.constant 0 : i32
    %c0_i32_0 = arith.constant 0 : i32
    return %arg0, %c0_i32 : i32, i32
  }
}

</mosaic_0001>

<llo_original>
// kernel: unispeech_classification_head.1
$region0: #{unispeech_classification_head.1}
  #allocation0 [shape = 'u32[]', space=smem, size = 0x4, offset = 0x4, fixed_abs, tag = 'smem constant byte address 0x4 - core index']
  #allocation1 [shape = 'u32[72,128]{1,0:T(1,128)}', space=vmem, size = 0x9000, scoped, tag = 'internal scratch']
  #allocation2 [shape = 'f32[16,1024]{1,0:T(8,128)}', space=vmem, size = 0x10000, scoped, tag = 'scratch operand']
  %s0 = inlined_call_operand.hbm [shape: f32[16,1024], index: 0, kind: input, shape index: {}]
  %s1 = inlined_call_operand.hbm [shape: bf16[1024,1024], index: 1, kind: input, shape index: {}]
  %s2 = inlined_call_operand.hbm [shape: f32[1,1024], index: 2, kind: input, shape index: {}]
  %s3 = inlined_call_operand.hbm [shape: bf16[1024,128], index: 3, kind: input, shape index: {}]
  %s4 = inlined_call_operand.hbm [shape: f32[1,128], index: 4, kind: input, shape index: {}]
  %s5 = inlined_call_operand.vmem [shape: f32[16,128], index: 5, kind: output, shape index: {}]
  %s6 = sld [smem:[#allocation0]]
  $region81: #{unispeech_classification_head.1} parent=0
    _
  %s8 = ssub.s32 1, %s6
  %s9 = scalar_select 0, %s8, %s6
  $region1: #{unispeech_classification_head.1} parent=0
    #allocation3 [shape = 'u8[32768]{0}', space=vmem, size = 0x8000, scoped, tag = 'input window, operand 0']
    #allocation4 [shape = 's32[2]{0}', space=sflag, size = 0x8, scoped, tag = 'scoped memory for unispeech_classification_head.1']
    #allocation5 [shape = 'u8[1048576]{0}', space=vmem, size = 0x100000, scoped, tag = 'input window, operand 1']
    #allocation6 [shape = 's32[2]{0}', space=sflag, size = 0x8, scoped, tag = 'scoped memory for unispeech_classification_head.1']
    #allocation7 [shape = 'u8[4096]{0}', space=vmem, size = 0x1000, scoped, tag = 'input window, operand 2, single buffered']
    #allocation8 [shape = 'u8[262144]{0}', space=vmem, size = 0x40000, scoped, tag = 'input window, operand 3, single buffered']
    #allocation9 [shape = 's32[1]{0}', space=sflag, size = 0x4, scoped, tag = 'scoped memory for unispeech_classification_head.1']
    #allocation10 [shape = 'u8[512]{0}', space=vmem, size = 0x400, scoped, tag = 'input window, operand 4, single buffered']
    %10 = vsyncpa [#allocation4], 0
    %s11 = scalar_lea.sflag [#allocation4], 1
    %12 = vsyncpa %s11, 0
    %13 = vsyncpa [#allocation6], 0
    %s14 = scalar_lea.sflag [#allocation6], 1
    %15 = vsyncpa %s14, 0
    %16 = vsyncpa [#allocation9], 0
    loop: start=0, step=1, limit=6
    $region2: #{unispeech_classification_head.1} parent=1 // loop_pre_header
      _
    $region3: #{unispeech_classification_head.1} parent=1 // loop_header
      %s18 = sphi 0, %s22
      %p19 = scmp.ge.s32.totalorder %s18, 6
      %s25 = sphi 0, %s37
      %s26 = sphi 0, %s33
      %s27 = sphi 0, %s25
      %s28 = sphi 0, %s26
      %s29 = sphi 0, %s27
      %s30 = sphi 0, %s28
      %s42 = sphi 0, %s44
      %s45 = sphi 0, %s42
      %s46 = sphi 0, %s45
      %s62 = sphi 0, %s46
      %s68 = sphi 0, %s70
      %s71 = sphi 0, %s68
      %s72 = sphi 0, %s71
      %s88 = sphi 0, %s72
      %s92 = sphi 0, %s92
      %s94 = sphi 0, %s92
      %s95 = sphi 0, %s94
      %s109 = sphi 0, %s95
      %s113 = sphi 0, %s113
      %s115 = sphi 0, %s113
      %s116 = sphi 0, %s115
      %s130 = sphi 0, %s116
      %s134 = sphi 0, %s134
      %s136 = sphi 0, %s134
      %s137 = sphi 0, %s136
      %s151 = sphi 0, %s137
      %s157 = sphi 0, %s159
      %s160 = sphi 0, %s157
      %s161 = sphi 0, %s160
      %s177 = sphi 0, %s161
    $region4: #{unispeech_classification_head.1} parent=1 // loop_header_branch
      %21 = sbr.rel (%p19) target = $region8
    $region5: #{unispeech_classification_head.1} parent=1 // loop_body
      %s23 = ssub.s32 %s18, 1
      %s24 = ssub.s32 %s18, 2
      %s31 = sadd.s32 1, %s26
      %p32 = scmp.ge.s32.totalorder %s31, 4
      %s33 = scalar_select %p32, 0, %s31
      %s34 = sadd.s32 1, %s25
      %s35 = scalar_select %p32, %s34, %s25
      %p36 = scmp.ge.s32.totalorder %s35, 1
      %s37 = scalar_select %p36, 0, %s35
      %s38 = ssub.s32 %s25, %s37
      %s39 = ssub.s32 %s26, %s33
      %s40 = sor.u32 %s38, %s39
      %p41 = scmp.eq.s32.totalorder %s40, 0
      %s43 = sadd.s32 %s42, 1
      %s44 = scalar_select %p41, %s42, %s43
      %p47 = pneg %p41
      %p48 = scmp.eq.s32.totalorder %s18, 3
      %p49 = por %p47, %p48
      %p50 = scmp.ne.s32.totalorder %s42, %s45
      %p51 = scmp.eq.s32.totalorder %s18, 0
      %p52 = por %p50, %p51
      %p53 = scmp.ne.s32.totalorder %s42, %s45
      %p54 = scmp.eq.s32.totalorder %s23, 3
      %p55 = por %p53, %p54
      %p56 = scmp.ne.s32.totalorder %s45, %s46
      %p57 = scmp.eq.s32.totalorder %s23, 0
      %p58 = por %p56, %p57
      %p59 = scmp.ne.s32.totalorder %s45, %s46
      %p60 = scmp.eq.s32.totalorder %s24, 3
      %p61 = por %p59, %p60
      %p63 = scmp.ne.s32.totalorder %s46, %s62
      %p64 = scmp.eq.s32.totalorder %s24, 0
      %p65 = por %p63, %p64
      %s66 = ssub.s32 %s26, %s33
      %p67 = scmp.eq.s32.totalorder %s66, 0
      %s69 = sadd.s32 %s68, 1
      %s70 = scalar_select %p67, %s68, %s69
      %p73 = pneg %p67
      %p74 = scmp.eq.s32.totalorder %s18, 3
      %p75 = por %p73, %p74
      %p76 = scmp.ne.s32.totalorder %s68, %s71
      %p77 = scmp.eq.s32.totalorder %s18, 0
      %p78 = por %p76, %p77
      %p79 = scmp.ne.s32.totalorder %s68, %s71
      %p80 = scmp.eq.s32.totalorder %s23, 3
      %p81 = por %p79, %p80
      %p82 = scmp.ne.s32.totalorder %s71, %s72
      %p83 = scmp.eq.s32.totalorder %s23, 0
      %p84 = por %p82, %p83
      %p85 = scmp.ne.s32.totalorder %s71, %s72
      %p86 = scmp.eq.s32.totalorder %s24, 3
      %p87 = por %p85, %p86
      %p89 = scmp.ne.s32.totalorder %s72, %s88
      %p90 = scmp.eq.s32.totalorder %s24, 0
      %p91 = por %p89, %p90
      %s93 = sadd.s32 %s92, 1
      %p96 = scmp.eq.s32.totalorder %s18, 3
      %p97 = scmp.ne.s32.totalorder %s92, %s94
      %p98 = scmp.eq.s32.totalorder %s18, 0
      %p99 = por %p97, %p98
      %p100 = scmp.ne.s32.totalorder %s92, %s94
      %p101 = scmp.eq.s32.totalorder %s23, 3
      %p102 = por %p100, %p101
      %p103 = scmp.ne.s32.totalorder %s94, %s95
      %p104 = scmp.eq.s32.totalorder %s23, 0
      %p105 = por %p103, %p104
      %p106 = scmp.ne.s32.totalorder %s94, %s95
      %p107 = scmp.eq.s32.totalorder %s24, 3
      %p108 = por %p106, %p107
      %p110 = scmp.ne.s32.totalorder %s95, %s109
      %p111 = scmp.eq.s32.totalorder %s24, 0
      %p112 = por %p110, %p111
      %s114 = sadd.s32 %s113, 1
      %p117 = scmp.eq.s32.totalorder %s18, 3
      %p118 = scmp.ne.s32.totalorder %s113, %s115
      %p119 = scmp.eq.s32.totalorder %s18, 0
      %p120 = por %p118, %p119
      %p121 = scmp.ne.s32.totalorder %s113, %s115
      %p122 = scmp.eq.s32.totalorder %s23, 3
      %p123 = por %p121, %p122
      %p124 = scmp.ne.s32.totalorder %s115, %s116
      %p125 = scmp.eq.s32.totalorder %s23, 0
      %p126 = por %p124, %p125
      %p127 = scmp.ne.s32.totalorder %s115, %s116
      %p128 = scmp.eq.s32.totalorder %s24, 3
      %p129 = por %p127, %p128
      %p131 = scmp.ne.s32.totalorder %s116, %s130
      %p132 = scmp.eq.s32.totalorder %s24, 0
      %p133 = por %p131, %p132
      %s135 = sadd.s32 %s134, 1
      %p138 = scmp.eq.s32.totalorder %s18, 3
      %p139 = scmp.ne.s32.totalorder %s134, %s136
      %p140 = scmp.eq.s32.totalorder %s18, 0
      %p141 = por %p139, %p140
      %p142 = scmp.ne.s32.totalorder %s134, %s136
      %p143 = scmp.eq.s32.totalorder %s23, 3
      %p144 = por %p142, %p143
      %p145 = scmp.ne.s32.totalorder %s136, %s137
      %p146 = scmp.eq.s32.totalorder %s23, 0
      %p147 = por %p145, %p146
      %p148 = scmp.ne.s32.totalorder %s136, %s137
      %p149 = scmp.eq.s32.totalorder %s24, 3
      %p150 = por %p148, %p149
      %p152 = scmp.ne.s32.totalorder %s137, %s151
      %p153 = scmp.eq.s32.totalorder %s24, 0
      %p154 = por %p152, %p153
      %s155 = ssub.s32 %s25, %s37
      %p156 = scmp.eq.s32.totalorder %s155, 0
      %s158 = sadd.s32 %s157, 1
      %s159 = scalar_select %p156, %s157, %s158
      %p162 = pneg %p156
      %p163 = scmp.eq.s32.totalorder %s18, 3
      %p164 = por %p162, %p163
      %p165 = scmp.ne.s32.totalorder %s157, %s160
      %p166 = scmp.eq.s32.totalorder %s18, 0
      %p167 = por %p165, %p166
      %p168 = scmp.ne.s32.totalorder %s157, %s160
      %p169 = scmp.eq.s32.totalorder %s23, 3
      %p170 = por %p168, %p169
      %p171 = scmp.ne.s32.totalorder %s160, %s161
      %p172 = scmp.eq.s32.totalorder %s23, 0
      %p173 = por %p171, %p172
      %p174 = scmp.ne.s32.totalorder %s160, %s161
      %p175 = scmp.eq.s32.totalorder %s24, 3
      %p176 = por %p174, %p175
      %p178 = scmp.ne.s32.totalorder %s161, %s177
      %p179 = scmp.eq.s32.totalorder %s24, 0
      %p180 = por %p178, %p179
      %p181 = scmp.le.s32.totalorder 1, %s18
      %p182 = scmp.lt.s32.totalorder %s18, 5
      %p183 = pnand %p181, %p182
      %p184 = pneg %p183
      // Predicated region
      $region9: #{unispeech_classification_head.1} parent=5 // pred_check
        _
      $region10: #{unispeech_classification_head.1} parent=5 // pred_check_branch
        %186 = sbr.rel (%p183) target = $region12
      $region11: #{unispeech_classification_head.1} parent=5 // pred_region
        %s187 = ssub.s32 %s18, 1
        // Predicated region
        $region13: #{unispeech_classification_head.1} parent=11 // pred_check
          %p188 = pneg %p105
        $region14: #{unispeech_classification_head.1} parent=11 // pred_check_branch
          %190 = sbr.rel (%p188) target = $region16
        $region15: #{unispeech_classification_head.1} parent=11 // pred_region
          %192 = vsyncadd [#allocation6], 0
          %s194 = sshll.u32 %s2, 4
          %s195 = int_to_ptr.hbm [resolvable:$true] %s194
          %s196 = sshll.u32 [#allocation7], 4
          %s197 = int_to_ptr.vmem [resolvable:$true] %s196
          %199 = dma.hbm_to_vmem [thread:$0]  %s195, 128, %s197, [#allocation6]
        $region16: #{unispeech_classification_head.1} parent=11 // pred_fallthru
          _
        // Predicated region
        $region17: #{unispeech_classification_head.1} parent=11 // pred_check
          %p200 = pneg %p126
        $region18: #{unispeech_classification_head.1} parent=11 // pred_check_branch
          %202 = sbr.rel (%p200) target = $region20
        $region19: #{unispeech_classification_head.1} parent=11 // pred_region
          %204 = vsyncadd [#allocation9], 0
          %s205 = sshll.u32 %s3, 4
          %s206 = int_to_ptr.hbm [resolvable:$true] %s205
          %s207 = sshll.u32 [#allocation8], 4
          %s208 = int_to_ptr.vmem [resolvable:$true] %s207
          %213 = dma.hbm_to_vmem [thread:$0]  %s206, 8192, %s208, [#allocation9], 64, 64, 4
        $region20: #{unispeech_classification_head.1} parent=11 // pred_fallthru
          _
        // Predicated region
        $region21: #{unispeech_classification_head.1} parent=11 // pred_check
          %p214 = pneg %p147
        $region22: #{unispeech_classification_head.1} parent=11 // pred_check_branch
          %216 = sbr.rel (%p214) target = $region24
        $region23: #{unispeech_classification_head.1} parent=11 // pred_region
          %218 = vsyncadd [#allocation9], 0
          %s220 = sshll.u32 %s4, 4
          %s221 = int_to_ptr.hbm [resolvable:$true] %s220
          %s222 = sshll.u32 [#allocation10], 4
          %s223 = int_to_ptr.vmem [resolvable:$true] %s222
          %225 = dma.hbm_to_vmem [thread:$0]  %s221, 16, %s223, [#allocation9]
        $region24: #{unispeech_classification_head.1} parent=11 // pred_fallthru
          _
      $region12: #{unispeech_classification_head.1} parent=5 // pred_fallthru
        _
      %p226 = scmp.lt.s32.totalorder %s18, 4
      // Predicated region
      $region25: #{unispeech_classification_head.1} parent=5 // pred_check
        %p227 = pneg %p226
      $region26: #{unispeech_classification_head.1} parent=5 // pred_check_branch
        %229 = sbr.rel (%p227) target = $region28
      $region27: #{unispeech_classification_head.1} parent=5 // pred_region
        // Predicated region
        $region29: #{unispeech_classification_head.1} parent=27 // pred_check
          %p230 = pneg %p52
        $region30: #{unispeech_classification_head.1} parent=27 // pred_check_branch
          %232 = sbr.rel (%p230) target = $region32
        $region31: #{unispeech_classification_head.1} parent=27 // pred_region
          %s233 = sand.u32 %s42, 1
          %s234 = scalar_lea.sflag [#allocation4], %s233
          %s235 = sand.u32 %s42, 1
          %s236 = smul.addr %s235, 32
          %s237 = scalar_lea.vmem [#allocation3], %s236
          %s238 = smul.u32 2, %s25
          %s239 = smul.u32 2, %s26
          %241 = vsyncadd %s234, 0
          %s242 = smul.addr %s238, 8
          %s243 = sadd.s32 %s239, %s242
          %s244 = smul.addr %s243, 8
          %s245 = scalar_lea.hbm %s0, %s244
          %s246 = sshll.u32 %s245, 4
          %s247 = int_to_ptr.hbm [resolvable:$true] %s246
          %s248 = sshll.u32 %s237, 4
          %s249 = int_to_ptr.vmem [resolvable:$true] %s248
          %254 = dma.hbm_to_vmem [thread:$0]  %s247, 512, %s249, %s234, 1024, 256, 16
        $region32: #{unispeech_classification_head.1} parent=27 // pred_fallthru
          _
        // Predicated region
        $region33: #{unispeech_classification_head.1} parent=27 // pred_check
          %p255 = pneg %p78
        $region34: #{unispeech_classification_head.1} parent=27 // pred_check_branch
          %257 = sbr.rel (%p255) target = $region36
        $region35: #{unispeech_classification_head.1} parent=27 // pred_region
          %s258 = sand.u32 %s18, 1
          %s259 = scalar_lea.sflag [#allocation6], %s258
          %s260 = sand.u32 %s68, 1
          %s261 = smul.addr %s260, 1024
          %s262 = scalar_lea.vmem [#allocation5], %s261
          %s263 = smul.u32 32, %s26
          %265 = vsyncadd %s259, 0
          %s266 = smul.addr %s263, 8
          %s267 = smul.addr %s266, 4
          %s268 = scalar_lea.hbm %s1, %s267
          %s269 = sshll.u32 %s268, 4
          %s270 = int_to_ptr.hbm [resolvable:$true] %s269
          %s271 = sshll.u32 %s262, 4
          %s272 = int_to_ptr.vmem [resolvable:$true] %s271
          %277 = dma.hbm_to_vmem [thread:$0]  %s270, 16384, %s272, %s259, 512, 512, 32
        $region36: #{unispeech_classification_head.1} parent=27 // pred_fallthru
          _
      $region28: #{unispeech_classification_head.1} parent=5 // pred_fallthru
        _
      %p278 = scmp.le.s32.totalorder 1, %s18
      %p279 = scmp.lt.s32.totalorder %s18, 5
      %p280 = pnand %p278, %p279
      %p281 = pneg %p280
      // Predicated region
      $region37: #{unispeech_classification_head.1} parent=5 // pred_check
        _
      $region38: #{unispeech_classification_head.1} parent=5 // pred_check_branch
        %283 = sbr.rel (%p280) target = $region40
      $region39: #{unispeech_classification_head.1} parent=5 // pred_region
        %s284 = ssub.s32 %s18, 1
        %s285 = sand.u32 %s45, 1
        %s286 = scalar_lea.sflag [#allocation4], %s285
        %s287 = sand.u32 %s45, 1
        %s288 = smul.addr %s287, 32
        %s289 = scalar_lea.vmem [#allocation3], %s288
        // Predicated region
        $region41: #{unispeech_classification_head.1} parent=39 // pred_check
          %p290 = pneg %p58
        $region42: #{unispeech_classification_head.1} parent=39 // pred_check_branch
          %292 = sbr.rel (%p290) target = $region44
        $region43: #{unispeech_classification_head.1} parent=39 // pred_region
          %294 = dma.done %s286, 512
        $region44: #{unispeech_classification_head.1} parent=39 // pred_fallthru
          _
        %s295 = sand.u32 %s23, 1
        %s296 = scalar_lea.sflag [#allocation6], %s295
        %s297 = sand.u32 %s71, 1
        %s298 = smul.addr %s297, 1024
        %s299 = scalar_lea.vmem [#allocation5], %s298
        // Predicated region
        $region45: #{unispeech_classification_head.1} parent=39 // pred_check
          %p300 = pneg %p84
        $region46: #{unispeech_classification_head.1} parent=39 // pred_check_branch
          %302 = sbr.rel (%p300) target = $region48
        $region47: #{unispeech_classification_head.1} parent=39 // pred_region
          %304 = dma.done %s296, 16384
        $region48: #{unispeech_classification_head.1} parent=39 // pred_fallthru
          _
        // Predicated region
        $region49: #{unispeech_classification_head.1} parent=39 // pred_check
          %p305 = pneg %p105
        $region50: #{unispeech_classification_head.1} parent=39 // pred_check_branch
          %307 = sbr.rel (%p305) target = $region52
        $region51: #{unispeech_classification_head.1} parent=39 // pred_region
          %309 = dma.done [#allocation6], 128
        $region52: #{unispeech_classification_head.1} parent=39 // pred_fallthru
          _
        // Predicated region
        $region53: #{unispeech_classification_head.1} parent=39 // pred_check
          %p310 = pneg %p126
        $region54: #{unispeech_classification_head.1} parent=39 // pred_check_branch
          %312 = sbr.rel (%p310) target = $region56
        $region55: #{unispeech_classification_head.1} parent=39 // pred_region
          %314 = dma.done [#allocation9], 8192
        $region56: #{unispeech_classification_head.1} parent=39 // pred_fallthru
          _
        // Predicated region
        $region57: #{unispeech_classification_head.1} parent=39 // pred_check
          %p315 = pneg %p147
        $region58: #{unispeech_classification_head.1} parent=39 // pred_check_branch
          %317 = sbr.rel (%p315) target = $region60
        $region59: #{unispeech_classification_head.1} parent=39 // pred_region
          %319 = dma.done [#allocation9], 16
        $region60: #{unispeech_classification_head.1} parent=39 // pred_fallthru
          _
        %s320 = sand.u32 %s45, 1
        %s321 = scalar_lea.sflag [#allocation4], %s320
        %s322 = sand.u32 %s45, 1
        %s323 = smul.addr %s322, 32
        %s324 = scalar_lea.vmem [#allocation3], %s323
        %p325 = pneg %p58
        %p326 = pneg %p55
        %s327 = sand.u32 %s23, 1
        %s328 = scalar_lea.sflag [#allocation6], %s327
        %s329 = sand.u32 %s71, 1
        %s330 = smul.addr %s329, 1024
        %s331 = scalar_lea.vmem [#allocation5], %s330
        %p332 = pneg %p84
        %p333 = pneg %p81
        %p334 = pneg %p105
        %p335 = pneg %p102
        %p336 = pneg %p126
        %p337 = pneg %p123
        %p338 = pneg %p147
        %p339 = pneg %p144
        %p340 = pneg %p173
        %p341 = pneg %p170
        %s342 = smul.u32 2, %s27
        %p343 = scmp.lt.s32.totalorder %s342, 1
        %s344 = scalar_select %p343, %s342, 1
        %s345 = smul.addr %s344, 8
        %s346 = scalar_lea.vmem %s5, %s345
        %s347 = smul.u32 2, %s27
        %s348 = smul.u32 2, %s28
        %s349 = smul.u32 32, %s28
        %s350 = smul.u32 2, %s27
        %p351 = scmp.lt.s32.totalorder %s350, 1
        %s352 = scalar_select %p351, %s350, 1
        %s353 = smul.addr %s352, 8
        %s354 = scalar_lea.vmem %s5, %s353
        %s355 = smul.u32 2, %s27
        %p356 = scmp.eq.s32.totalorder %s28, 0
        // Predicated region
        $region61: #{unispeech_classification_head.1} parent=39 // pred_check
          %p357 = pneg %p356
        $region62: #{unispeech_classification_head.1} parent=39 // pred_check_branch
          %359 = sbr.rel (%p357) target = $region64
        $region63: #{unispeech_classification_head.1} parent=39 // pred_region
          %360 = vst [vmem:[#allocation2] sm:$0xff] 0.0
          %361 = vst [vmem:[#allocation2 + $0x8] sm:$0xff] 0.0
          %362 = vst [vmem:[#allocation2 + $0x10] sm:$0xff] 0.0
          %363 = vst [vmem:[#allocation2 + $0x18] sm:$0xff] 0.0
          %364 = vst [vmem:[#allocation2 + $0x20] sm:$0xff] 0.0
          %365 = vst [vmem:[#allocation2 + $0x28] sm:$0xff] 0.0
          %366 = vst [vmem:[#allocation2 + $0x30] sm:$0xff] 0.0
          %367 = vst [vmem:[#allocation2 + $0x38] sm:$0xff] 0.0
          %368 = vst [vmem:[#allocation2 + $0x40] sm:$0xff] 0.0
          %369 = vst [vmem:[#allocation2 + $0x48] sm:$0xff] 0.0
          %370 = vst [vmem:[#allocation2 + $0x50] sm:$0xff] 0.0
          %371 = vst [vmem:[#allocation2 + $0x58] sm:$0xff] 0.0
          %372 = vst [vmem:[#allocation2 + $0x60] sm:$0xff] 0.0
          %373 = vst [vmem:[#allocation2 + $0x68] sm:$0xff] 0.0
          %374 = vst [vmem:[#allocation2 + $0x70] sm:$0xff] 0.0
          %375 = vst [vmem:[#allocation2 + $0x78] sm:$0xff] 0.0
        $region64: #{unispeech_classification_head.1} parent=39 // pred_fallthru
          _
        %v376 = vld [vmem:[%s289] sm:$0xff]
        %v377 = vld [vmem:[%s289 + $0x8] sm:$0xff]
        %v378 = vld [vmem:[%s289 + $0x10] sm:$0xff]
        %v379 = vld [vmem:[%s289 + $0x18] sm:$0xff]
        %v380 = vpack.c.bf16 %v378, %v376
        %v381 = vpack.c.bf16 %v379, %v377
        %v382 = vld [vmem:[#allocation2] sm:$0xff]
        %v383 = vld [vmem:[#allocation2 + $0x8] sm:$0xff]
        %v384 = vld [vmem:[#allocation2 + $0x10] sm:$0xff]
        %v385 = vld [vmem:[#allocation2 + $0x18] sm:$0xff]
        %v386 = vld [vmem:[#allocation2 + $0x20] sm:$0xff]
        %v387 = vld [vmem:[#allocation2 + $0x28] sm:$0xff]
        %v388 = vld [vmem:[#allocation2 + $0x30] sm:$0xff]
        %v389 = vld [vmem:[#allocation2 + $0x38] sm:$0xff]
        %v390 = vld [vmem:[#allocation2 + $0x40] sm:$0xff]
        %v391 = vld [vmem:[#allocation2 + $0x48] sm:$0xff]
        %v392 = vld [vmem:[#allocation2 + $0x50] sm:$0xff]
        %v393 = vld [vmem:[#allocation2 + $0x58] sm:$0xff]
        %v394 = vld [vmem:[#allocation2 + $0x60] sm:$0xff]
        %v395 = vld [vmem:[#allocation2 + $0x68] sm:$0xff]
        %v396 = vld [vmem:[#allocation2 + $0x70] sm:$0xff]
        %v397 = vld [vmem:[#allocation2 + $0x78] sm:$0xff]
        %v398 = vld [vmem:[%s299] sm:$0xff]
        %v399 = vld [vmem:[%s299 + $0x8] sm:$0xff]
        %v400 = vld [vmem:[%s299 + $0x10] sm:$0xff]
        %v401 = vld [vmem:[%s299 + $0x18] sm:$0xff]
        %v402 = vld [vmem:[%s299 + $0x20] sm:$0xff]
        %v403 = vld [vmem:[%s299 + $0x28] sm:$0xff]
        %v404 = vld [vmem:[%s299 + $0x30] sm:$0xff]
        %v405 = vld [vmem:[%s299 + $0x38] sm:$0xff]
        %v406 = vld [vmem:[%s299 + $0x40] sm:$0xff]
        %v407 = vld [vmem:[%s299 + $0x48] sm:$0xff]
        %v408 = vld [vmem:[%s299 + $0x50] sm:$0xff]
        %v409 = vld [vmem:[%s299 + $0x58] sm:$0xff]
        %v410 = vld [vmem:[%s299 + $0x60] sm:$0xff]
        %v411 = vld [vmem:[%s299 + $0x68] sm:$0xff]
        %v412 = vld [vmem:[%s299 + $0x70] sm:$0xff]
        %v413 = vld [vmem:[%s299 + $0x78] sm:$0xff]
        %v414 = vld [vmem:[%s299 + $0x80] sm:$0xff]
        %v415 = vld [vmem:[%s299 + $0x88] sm:$0xff]
        %v416 = vld [vmem:[%s299 + $0x90] sm:$0xff]
        %v417 = vld [vmem:[%s299 + $0x98] sm:$0xff]
        %v418 = vld [vmem:[%s299 + $0xa0] sm:$0xff]
        %v419 = vld [vmem:[%s299 + $0xa8] sm:$0xff]
        %v420 = vld [vmem:[%s299 + $0xb0] sm:$0xff]
        %v421 = vld [vmem:[%s299 + $0xb8] sm:$0xff]
        %v422 = vld [vmem:[%s299 + $0xc0] sm:$0xff]
        %v423 = vld [vmem:[%s299 + $0xc8] sm:$0xff]
        %v424 = vld [vmem:[%s299 + $0xd0] sm:$0xff]
        %v425 = vld [vmem:[%s299 + $0xd8] sm:$0xff]
        %v426 = vld [vmem:[%s299 + $0xe0] sm:$0xff]
        %v427 = vld [vmem:[%s299 + $0xe8] sm:$0xff]
        %v428 = vld [vmem:[%s299 + $0xf0] sm:$0xff]
        %v429 = vld [vmem:[%s299 + $0xf8] sm:$0xff]
        %v430 = vld [vmem:[%s299 + $0x100] sm:$0xff]
        %v431 = vld [vmem:[%s299 + $0x108] sm:$0xff]
        %v432 = vld [vmem:[%s299 + $0x110] sm:$0xff]
        %v433 = vld [vmem:[%s299 + $0x118] sm:$0xff]
        %v434 = vld [vmem:[%s299 + $0x120] sm:$0xff]
        %v435 = vld [vmem:[%s299 + $0x128] sm:$0xff]
        %v436 = vld [vmem:[%s299 + $0x130] sm:$0xff]
        %v437 = vld [vmem:[%s299 + $0x138] sm:$0xff]
        %v438 = vld [vmem:[%s299 + $0x140] sm:$0xff]
        %v439 = vld [vmem:[%s299 + $0x148] sm:$0xff]
        %v440 = vld [vmem:[%s299 + $0x150] sm:$0xff]
        %v441 = vld [vmem:[%s299 + $0x158] sm:$0xff]
        %v442 = vld [vmem:[%s299 + $0x160] sm:$0xff]
        %v443 = vld [vmem:[%s299 + $0x168] sm:$0xff]
        %v444 = vld [vmem:[%s299 + $0x170] sm:$0xff]
        %v445 = vld [vmem:[%s299 + $0x178] sm:$0xff]
        %v446 = vld [vmem:[%s299 + $0x180] sm:$0xff]
        %v447 = vld [vmem:[%s299 + $0x188] sm:$0xff]
        %v448 = vld [vmem:[%s299 + $0x190] sm:$0xff]
        %v449 = vld [vmem:[%s299 + $0x198] sm:$0xff]
        %v450 = vld [vmem:[%s299 + $0x1a0] sm:$0xff]
        %v451 = vld [vmem:[%s299 + $0x1a8] sm:$0xff]
        %v452 = vld [vmem:[%s299 + $0x1b0] sm:$0xff]
        %v453 = vld [vmem:[%s299 + $0x1b8] sm:$0xff]
        %v454 = vld [vmem:[%s299 + $0x1c0] sm:$0xff]
        %v455 = vld [vmem:[%s299 + $0x1c8] sm:$0xff]
        %v456 = vld [vmem:[%s299 + $0x1d0] sm:$0xff]
        %v457 = vld [vmem:[%s299 + $0x1d8] sm:$0xff]
        %v458 = vld [vmem:[%s299 + $0x1e0] sm:$0xff]
        %v459 = vld [vmem:[%s299 + $0x1e8] sm:$0xff]
        %v460 = vld [vmem:[%s299 + $0x1f0] sm:$0xff]
        %v461 = vld [vmem:[%s299 + $0x1f8] sm:$0xff]
        %v462 = vld [vmem:[%s299 + $0x200] sm:$0xff]
        %v463 = vld [vmem:[%s299 + $0x208] sm:$0xff]
        %v464 = vld [vmem:[%s299 + $0x210] sm:$0xff]
        %v465 = vld [vmem:[%s299 + $0x218] sm:$0xff]
        %v466 = vld [vmem:[%s299 + $0x220] sm:$0xff]
        %v467 = vld [vmem:[%s299 + $0x228] sm:$0xff]
        %v468 = vld [vmem:[%s299 + $0x230] sm:$0xff]
        %v469 = vld [vmem:[%s299 + $0x238] sm:$0xff]
        %v470 = vld [vmem:[%s299 + $0x240] sm:$0xff]
        %v471 = vld [vmem:[%s299 + $0x248] sm:$0xff]
        %v472 = vld [vmem:[%s299 + $0x250] sm:$0xff]
        %v473 = vld [vmem:[%s299 + $0x258] sm:$0xff]
        %v474 = vld [vmem:[%s299 + $0x260] sm:$0xff]
        %v475 = vld [vmem:[%s299 + $0x268] sm:$0xff]
        %v476 = vld [vmem:[%s299 + $0x270] sm:$0xff]
        %v477 = vld [vmem:[%s299 + $0x278] sm:$0xff]
        %v478 = vld [vmem:[%s299 + $0x280] sm:$0xff]
        %v479 = vld [vmem:[%s299 + $0x288] sm:$0xff]
        %v480 = vld [vmem:[%s299 + $0x290] sm:$0xff]
        %v481 = vld [vmem:[%s299 + $0x298] sm:$0xff]
        %v482 = vld [vmem:[%s299 + $0x2a0] sm:$0xff]
        %v483 = vld [vmem:[%s299 + $0x2a8] sm:$0xff]
        %v484 = vld [vmem:[%s299 + $0x2b0] sm:$0xff]
        %v485 = vld [vmem:[%s299 + $0x2b8] sm:$0xff]
        %v486 = vld [vmem:[%s299 + $0x2c0] sm:$0xff]
        %v487 = vld [vmem:[%s299 + $0x2c8] sm:$0xff]
        %v488 = vld [vmem:[%s299 + $0x2d0] sm:$0xff]
        %v489 = vld [vmem:[%s299 + $0x2d8] sm:$0xff]
        %v490 = vld [vmem:[%s299 + $0x2e0] sm:$0xff]
        %v491 = vld [vmem:[%s299 + $0x2e8] sm:$0xff]
        %v492 = vld [vmem:[%s299 + $0x2f0] sm:$0xff]
        %v493 = vld [vmem:[%s299 + $0x2f8] sm:$0xff]
        %v494 = vld [vmem:[%s299 + $0x300] sm:$0xff]
        %v495 = vld [vmem:[%s299 + $0x308] sm:$0xff]
        %v496 = vld [vmem:[%s299 + $0x310] sm:$0xff]
        %v497 = vld [vmem:[%s299 + $0x318] sm:$0xff]
        %v498 = vld [vmem:[%s299 + $0x320] sm:$0xff]
        %v499 = vld [vmem:[%s299 + $0x328] sm:$0xff]
        %v500 = vld [vmem:[%s299 + $0x330] sm:$0xff]
        %v501 = vld [vmem:[%s299 + $0x338] sm:$0xff]
        %v502 = vld [vmem:[%s299 + $0x340] sm:$0xff]
        %v503 = vld [vmem:[%s299 + $0x348] sm:$0xff]
        %v504 = vld [vmem:[%s299 + $0x350] sm:$0xff]
        %v505 = vld [vmem:[%s299 + $0x358] sm:$0xff]
        %v506 = vld [vmem:[%s299 + $0x360] sm:$0xff]
        %v507 = vld [vmem:[%s299 + $0x368] sm:$0xff]
        %v508 = vld [vmem:[%s299 + $0x370] sm:$0xff]
        %v509 = vld [vmem:[%s299 + $0x378] sm:$0xff]
        %v510 = vld [vmem:[%s299 + $0x380] sm:$0xff]
        %v511 = vld [vmem:[%s299 + $0x388] sm:$0xff]
        %v512 = vld [vmem:[%s299 + $0x390] sm:$0xff]
        %v513 = vld [vmem:[%s299 + $0x398] sm:$0xff]
        %v514 = vld [vmem:[%s299 + $0x3a0] sm:$0xff]
        %v515 = vld [vmem:[%s299 + $0x3a8] sm:$0xff]
        %v516 = vld [vmem:[%s299 + $0x3b0] sm:$0xff]
        %v517 = vld [vmem:[%s299 + $0x3b8] sm:$0xff]
        %v518 = vld [vmem:[%s299 + $0x3c0] sm:$0xff]
        %v519 = vld [vmem:[%s299 + $0x3c8] sm:$0xff]
        %v520 = vld [vmem:[%s299 + $0x3d0] sm:$0xff]
        %v521 = vld [vmem:[%s299 + $0x3d8] sm:$0xff]
        %v522 = vld [vmem:[%s299 + $0x3e0] sm:$0xff]
        %v523 = vld [vmem:[%s299 + $0x3e8] sm:$0xff]
        %v524 = vld [vmem:[%s299 + $0x3f0] sm:$0xff]
        %v525 = vld [vmem:[%s299 + $0x3f8] sm:$0xff]
        %v654 = vunpack.c.l.b16 %v398
        %v655 = vunpack.c.h.b16 %v398
        %v656 = vunpack.c.l.b16 %v399
        %v657 = vunpack.c.h.b16 %v399
        %v658 = vunpack.c.l.b16 %v400
        %v659 = vunpack.c.h.b16 %v400
        %v660 = vunpack.c.l.b16 %v401
        %v661 = vunpack.c.h.b16 %v401
        %v662 = vunpack.c.l.b16 %v402
        %v663 = vunpack.c.h.b16 %v402
        %v664 = vunpack.c.l.b16 %v403
        %v665 = vunpack.c.h.b16 %v403
        %v666 = vunpack.c.l.b16 %v404
        %v667 = vunpack.c.h.b16 %v404
        %v668 = vunpack.c.l.b16 %v405
        %v669 = vunpack.c.h.b16 %v405
        %v670 = vunpack.c.l.b16 %v406
        %v671 = vunpack.c.h.b16 %v406
        %v672 = vunpack.c.l.b16 %v407
        %v673 = vunpack.c.h.b16 %v407
        %v674 = vunpack.c.l.b16 %v408
        %v675 = vunpack.c.h.b16 %v408
        %v676 = vunpack.c.l.b16 %v409
        %v677 = vunpack.c.h.b16 %v409
        %v678 = vunpack.c.l.b16 %v410
        %v679 = vunpack.c.h.b16 %v410
        %v680 = vunpack.c.l.b16 %v411
        %v681 = vunpack.c.h.b16 %v411
        %v682 = vunpack.c.l.b16 %v412
        %v683 = vunpack.c.h.b16 %v412
        %v684 = vunpack.c.l.b16 %v413
        %v685 = vunpack.c.h.b16 %v413
        %v686 = vunpack.c.l.b16 %v414
        %v687 = vunpack.c.h.b16 %v414
        %v688 = vunpack.c.l.b16 %v415
        %v689 = vunpack.c.h.b16 %v415
        %v690 = vunpack.c.l.b16 %v416
        %v691 = vunpack.c.h.b16 %v416
        %v692 = vunpack.c.l.b16 %v417
        %v693 = vunpack.c.h.b16 %v417
        %v694 = vunpack.c.l.b16 %v418
        %v695 = vunpack.c.h.b16 %v418
        %v696 = vunpack.c.l.b16 %v419
        %v697 = vunpack.c.h.b16 %v419
        %v698 = vunpack.c.l.b16 %v420
        %v699 = vunpack.c.h.b16 %v420
        %v700 = vunpack.c.l.b16 %v421
        %v701 = vunpack.c.h.b16 %v421
        %v702 = vunpack.c.l.b16 %v422
        %v703 = vunpack.c.h.b16 %v422
        %v704 = vunpack.c.l.b16 %v423
        %v705 = vunpack.c.h.b16 %v423
        %v706 = vunpack.c.l.b16 %v424
        %v707 = vunpack.c.h.b16 %v424
        %v708 = vunpack.c.l.b16 %v425
        %v709 = vunpack.c.h.b16 %v425
        %v710 = vunpack.c.l.b16 %v426
        %v711 = vunpack.c.h.b16 %v426
        %v712 = vunpack.c.l.b16 %v427
        %v713 = vunpack.c.h.b16 %v427
        %v714 = vunpack.c.l.b16 %v428
        %v715 = vunpack.c.h.b16 %v428
        %v716 = vunpack.c.l.b16 %v429
        %v717 = vunpack.c.h.b16 %v429
        %v718 = vunpack.c.l.b16 %v430
        %v719 = vunpack.c.h.b16 %v430
        %v720 = vunpack.c.l.b16 %v431
        %v721 = vunpack.c.h.b16 %v431
        %v722 = vunpack.c.l.b16 %v432
        %v723 = vunpack.c.h.b16 %v432
        %v724 = vunpack.c.l.b16 %v433
        %v725 = vunpack.c.h.b16 %v433
        %v726 = vunpack.c.l.b16 %v434
        %v727 = vunpack.c.h.b16 %v434
        %v728 = vunpack.c.l.b16 %v435
        %v729 = vunpack.c.h.b16 %v435
        %v730 = vunpack.c.l.b16 %v436
        %v731 = vunpack.c.h.b16 %v436
        %v732 = vunpack.c.l.b16 %v437
        %v733 = vunpack.c.h.b16 %v437
        %v734 = vunpack.c.l.b16 %v438
        %v735 = vunpack.c.h.b16 %v438
        %v736 = vunpack.c.l.b16 %v439
        %v737 = vunpack.c.h.b16 %v439
        %v738 = vunpack.c.l.b16 %v440
        %v739 = vunpack.c.h.b16 %v440
        %v740 = vunpack.c.l.b16 %v441
        %v741 = vunpack.c.h.b16 %v441
        %v742 = vunpack.c.l.b16 %v442
        %v743 = vunpack.c.h.b16 %v442
        %v744 = vunpack.c.l.b16 %v443
        %v745 = vunpack.c.h.b16 %v443
        %v746 = vunpack.c.l.b16 %v444
        %v747 = vunpack.c.h.b16 %v444
        %v748 = vunpack.c.l.b16 %v445
        %v749 = vunpack.c.h.b16 %v445
        %v750 = vunpack.c.l.b16 %v446
        %v751 = vunpack.c.h.b16 %v446
        %v752 = vunpack.c.l.b16 %v447
        %v753 = vunpack.c.h.b16 %v447
        %v754 = vunpack.c.l.b16 %v448
        %v755 = vunpack.c.h.b16 %v448
        %v756 = vunpack.c.l.b16 %v449
        %v757 = vunpack.c.h.b16 %v449
        %v758 = vunpack.c.l.b16 %v450
        %v759 = vunpack.c.h.b16 %v450
        %v760 = vunpack.c.l.b16 %v451
        %v761 = vunpack.c.h.b16 %v451
        %v762 = vunpack.c.l.b16 %v452
        %v763 = vunpack.c.h.b16 %v452
        %v764 = vunpack.c.l.b16 %v453
        %v765 = vunpack.c.h.b16 %v453
        %v766 = vunpack.c.l.b16 %v454
        %v767 = vunpack.c.h.b16 %v454
        %v768 = vunpack.c.l.b16 %v455
        %v769 = vunpack.c.h.b16 %v455
        %v770 = vunpack.c.l.b16 %v456
        %v771 = vunpack.c.h.b16 %v456
        %v772 = vunpack.c.l.b16 %v457
        %v773 = vunpack.c.h.b16 %v457
        %v774 = vunpack.c.l.b16 %v458
        %v775 = vunpack.c.h.b16 %v458
        %v776 = vunpack.c.l.b16 %v459
        %v777 = vunpack.c.h.b16 %v459
        %v778 = vunpack.c.l.b16 %v460
        %v779 = vunpack.c.h.b16 %v460
        %v780 = vunpack.c.l.b16 %v461
        %v781 = vunpack.c.h.b16 %v461
        %v782 = vunpack.c.l.b16 %v462
        %v783 = vunpack.c.h.b16 %v462
        %v784 = vunpack.c.l.b16 %v463
        %v785 = vunpack.c.h.b16 %v463
        %v786 = vunpack.c.l.b16 %v464
        %v787 = vunpack.c.h.b16 %v464
        %v788 = vunpack.c.l.b16 %v465
        %v789 = vunpack.c.h.b16 %v465
        %v790 = vunpack.c.l.b16 %v466
        %v791 = vunpack.c.h.b16 %v466
        %v792 = vunpack.c.l.b16 %v467
        %v793 = vunpack.c.h.b16 %v467
        %v794 = vunpack.c.l.b16 %v468
        %v795 = vunpack.c.h.b16 %v468
        %v796 = vunpack.c.l.b16 %v469
        %v797 = vunpack.c.h.b16 %v469
        %v798 = vunpack.c.l.b16 %v470
        %v799 = vunpack.c.h.b16 %v470
        %v800 = vunpack.c.l.b16 %v471
        %v801 = vunpack.c.h.b16 %v471
        %v802 = vunpack.c.l.b16 %v472
        %v803 = vunpack.c.h.b16 %v472
        %v804 = vunpack.c.l.b16 %v473
        %v805 = vunpack.c.h.b16 %v473
        %v806 = vunpack.c.l.b16 %v474
        %v807 = vunpack.c.h.b16 %v474
        %v808 = vunpack.c.l.b16 %v475
        %v809 = vunpack.c.h.b16 %v475
        %v810 = vunpack.c.l.b16 %v476
        %v811 = vunpack.c.h.b16 %v476
        %v812 = vunpack.c.l.b16 %v477
        %v813 = vunpack.c.h.b16 %v477
        %v814 = vunpack.c.l.b16 %v478
        %v815 = vunpack.c.h.b16 %v478
        %v816 = vunpack.c.l.b16 %v479
        %v817 = vunpack.c.h.b16 %v479
        %v818 = vunpack.c.l.b16 %v480
        %v819 = vunpack.c.h.b16 %v480
        %v820 = vunpack.c.l.b16 %v481
        %v821 = vunpack.c.h.b16 %v481
        %v822 = vunpack.c.l.b16 %v482
        %v823 = vunpack.c.h.b16 %v482
        %v824 = vunpack.c.l.b16 %v483
        %v825 = vunpack.c.h.b16 %v483
        %v826 = vunpack.c.l.b16 %v484
        %v827 = vunpack.c.h.b16 %v484
        %v828 = vunpack.c.l.b16 %v485
        %v829 = vunpack.c.h.b16 %v485
        %v830 = vunpack.c.l.b16 %v486
        %v831 = vunpack.c.h.b16 %v486
        %v832 = vunpack.c.l.b16 %v487
        %v833 = vunpack.c.h.b16 %v487
        %v834 = vunpack.c.l.b16 %v488
        %v835 = vunpack.c.h.b16 %v488
        %v836 = vunpack.c.l.b16 %v489
        %v837 = vunpack.c.h.b16 %v489
        %v838 = vunpack.c.l.b16 %v490
        %v839 = vunpack.c.h.b16 %v490
        %v840 = vunpack.c.l.b16 %v491
        %v841 = vunpack.c.h.b16 %v491
        %v842 = vunpack.c.l.b16 %v492
        %v843 = vunpack.c.h.b16 %v492
        %v844 = vunpack.c.l.b16 %v493
        %v845 = vunpack.c.h.b16 %v493
        %v846 = vunpack.c.l.b16 %v494
        %v847 = vunpack.c.h.b16 %v494
        %v848 = vunpack.c.l.b16 %v495
        %v849 = vunpack.c.h.b16 %v495
        %v850 = vunpack.c.l.b16 %v496
        %v851 = vunpack.c.h.b16 %v496
        %v852 = vunpack.c.l.b16 %v497
        %v853 = vunpack.c.h.b16 %v497
        %v854 = vunpack.c.l.b16 %v498
        %v855 = vunpack.c.h.b16 %v498
        %v856 = vunpack.c.l.b16 %v499
        %v857 = vunpack.c.h.b16 %v499
        %v858 = vunpack.c.l.b16 %v500
        %v859 = vunpack.c.h.b16 %v500
        %v860 = vunpack.c.l.b16 %v501
        %v861 = vunpack.c.h.b16 %v501
        %v862 = vunpack.c.l.b16 %v502
        %v863 = vunpack.c.h.b16 %v502
        %v864 = vunpack.c.l.b16 %v503
        %v865 = vunpack.c.h.b16 %v503
        %v866 = vunpack.c.l.b16 %v504
        %v867 = vunpack.c.h.b16 %v504
        %v868 = vunpack.c.l.b16 %v505
        %v869 = vunpack.c.h.b16 %v505
        %v870 = vunpack.c.l.b16 %v506
        %v871 = vunpack.c.h.b16 %v506
        %v872 = vunpack.c.l.b16 %v507
        %v873 = vunpack.c.h.b16 %v507
        %v874 = vunpack.c.l.b16 %v508
        %v875 = vunpack.c.h.b16 %v508
        %v876 = vunpack.c.l.b16 %v509
        %v877 = vunpack.c.h.b16 %v509
        %v878 = vunpack.c.l.b16 %v510
        %v879 = vunpack.c.h.b16 %v510
        %v880 = vunpack.c.l.b16 %v511
        %v881 = vunpack.c.h.b16 %v511
        %v882 = vunpack.c.l.b16 %v512
        %v883 = vunpack.c.h.b16 %v512
        %v884 = vunpack.c.l.b16 %v513
        %v885 = vunpack.c.h.b16 %v513
        %v886 = vunpack.c.l.b16 %v514
        %v887 = vunpack.c.h.b16 %v514
        %v888 = vunpack.c.l.b16 %v515
        %v889 = vunpack.c.h.b16 %v515
        %v890 = vunpack.c.l.b16 %v516
        %v891 = vunpack.c.h.b16 %v516
        %v892 = vunpack.c.l.b16 %v517
        %v893 = vunpack.c.h.b16 %v517
        %v894 = vunpack.c.l.b16 %v518
        %v895 = vunpack.c.h.b16 %v518
        %v896 = vunpack.c.l.b16 %v519
        %v897 = vunpack.c.h.b16 %v519
        %v898 = vunpack.c.l.b16 %v520
        %v899 = vunpack.c.h.b16 %v520
        %v900 = vunpack.c.l.b16 %v521
        %v901 = vunpack.c.h.b16 %v521
        %v902 = vunpack.c.l.b16 %v522
        %v903 = vunpack.c.h.b16 %v522
        %v904 = vunpack.c.l.b16 %v523
        %v905 = vunpack.c.h.b16 %v523
        %v906 = vunpack.c.l.b16 %v524
        %v907 = vunpack.c.h.b16 %v524
        %v908 = vunpack.c.l.b16 %v525
        %v909 = vunpack.c.h.b16 %v525
        %v910 = vpack.c.b16 %v662, %v654
        %v911 = vpack.c.b16 %v663, %v655
        %v912 = vpack.c.b16 %v664, %v656
        %v913 = vpack.c.b16 %v665, %v657
        %v914 = vpack.c.b16 %v666, %v658
        %v915 = vpack.c.b16 %v667, %v659
        %v916 = vpack.c.b16 %v668, %v660
        %v917 = vpack.c.b16 %v669, %v661
        %v918 = vpack.c.b16 %v678, %v670
        %v919 = vpack.c.b16 %v679, %v671
        %v920 = vpack.c.b16 %v680, %v672
        %v921 = vpack.c.b16 %v681, %v673
        %v922 = vpack.c.b16 %v682, %v674
        %v923 = vpack.c.b16 %v683, %v675
        %v924 = vpack.c.b16 %v684, %v676
        %v925 = vpack.c.b16 %v685, %v677
        %v926 = vpack.c.b16 %v694, %v686
        %v927 = vpack.c.b16 %v695, %v687
        %v928 = vpack.c.b16 %v696, %v688
        %v929 = vpack.c.b16 %v697, %v689
        %v930 = vpack.c.b16 %v698, %v690
        %v931 = vpack.c.b16 %v699, %v691
        %v932 = vpack.c.b16 %v700, %v692
        %v933 = vpack.c.b16 %v701, %v693
        %v934 = vpack.c.b16 %v710, %v702
        %v935 = vpack.c.b16 %v711, %v703
        %v936 = vpack.c.b16 %v712, %v704
        %v937 = vpack.c.b16 %v713, %v705
        %v938 = vpack.c.b16 %v714, %v706
        %v939 = vpack.c.b16 %v715, %v707
        %v940 = vpack.c.b16 %v716, %v708
        %v941 = vpack.c.b16 %v717, %v709
        %v942 = vpack.c.b16 %v726, %v718
        %v943 = vpack.c.b16 %v727, %v719
        %v944 = vpack.c.b16 %v728, %v720
        %v945 = vpack.c.b16 %v729, %v721
        %v946 = vpack.c.b16 %v730, %v722
        %v947 = vpack.c.b16 %v731, %v723
        %v948 = vpack.c.b16 %v732, %v724
        %v949 = vpack.c.b16 %v733, %v725
        %v950 = vpack.c.b16 %v742, %v734
        %v951 = vpack.c.b16 %v743, %v735
        %v952 = vpack.c.b16 %v744, %v736
        %v953 = vpack.c.b16 %v745, %v737
        %v954 = vpack.c.b16 %v746, %v738
        %v955 = vpack.c.b16 %v747, %v739
        %v956 = vpack.c.b16 %v748, %v740
        %v957 = vpack.c.b16 %v749, %v741
        %v958 = vpack.c.b16 %v758, %v750
        %v959 = vpack.c.b16 %v759, %v751
        %v960 = vpack.c.b16 %v760, %v752
        %v961 = vpack.c.b16 %v761, %v753
        %v962 = vpack.c.b16 %v762, %v754
        %v963 = vpack.c.b16 %v763, %v755
        %v964 = vpack.c.b16 %v764, %v756
        %v965 = vpack.c.b16 %v765, %v757
        %v966 = vpack.c.b16 %v774, %v766
        %v967 = vpack.c.b16 %v775, %v767
        %v968 = vpack.c.b16 %v776, %v768
        %v969 = vpack.c.b16 %v777, %v769
        %v970 = vpack.c.b16 %v778, %v770
        %v971 = vpack.c.b16 %v779, %v771
        %v972 = vpack.c.b16 %v780, %v772
        %v973 = vpack.c.b16 %v781, %v773
        %v974 = vpack.c.b16 %v790, %v782
        %v975 = vpack.c.b16 %v791, %v783
        %v976 = vpack.c.b16 %v792, %v784
        %v977 = vpack.c.b16 %v793, %v785
        %v978 = vpack.c.b16 %v794, %v786
        %v979 = vpack.c.b16 %v795, %v787
        %v980 = vpack.c.b16 %v796, %v788
        %v981 = vpack.c.b16 %v797, %v789
        %v982 = vpack.c.b16 %v806, %v798
        %v983 = vpack.c.b16 %v807, %v799
        %v984 = vpack.c.b16 %v808, %v800
        %v985 = vpack.c.b16 %v809, %v801
        %v986 = vpack.c.b16 %v810, %v802
        %v987 = vpack.c.b16 %v811, %v803
        %v988 = vpack.c.b16 %v812, %v804
        %v989 = vpack.c.b16 %v813, %v805
        %v990 = vpack.c.b16 %v822, %v814
        %v991 = vpack.c.b16 %v823, %v815
        %v992 = vpack.c.b16 %v824, %v816
        %v993 = vpack.c.b16 %v825, %v817
        %v994 = vpack.c.b16 %v826, %v818
        %v995 = vpack.c.b16 %v827, %v819
        %v996 = vpack.c.b16 %v828, %v820
        %v997 = vpack.c.b16 %v829, %v821
        %v998 = vpack.c.b16 %v838, %v830
        %v999 = vpack.c.b16 %v839, %v831
        %v1000 = vpack.c.b16 %v840, %v832
        %v1001 = vpack.c.b16 %v841, %v833
        %v1002 = vpack.c.b16 %v842, %v834
        %v1003 = vpack.c.b16 %v843, %v835
        %v1004 = vpack.c.b16 %v844, %v836
        %v1005 = vpack.c.b16 %v845, %v837
        %v1006 = vpack.c.b16 %v854, %v846
        %v1007 = vpack.c.b16 %v855, %v847
        %v1008 = vpack.c.b16 %v856, %v848
        %v1009 = vpack.c.b16 %v857, %v849
        %v1010 = vpack.c.b16 %v858, %v850
        %v1011 = vpack.c.b16 %v859, %v851
        %v1012 = vpack.c.b16 %v860, %v852
        %v1013 = vpack.c.b16 %v861, %v853
        %v1014 = vpack.c.b16 %v870, %v862
        %v1015 = vpack.c.b16 %v871, %v863
        %v1016 = vpack.c.b16 %v872, %v864
        %v1017 = vpack.c.b16 %v873, %v865
        %v1018 = vpack.c.b16 %v874, %v866
        %v1019 = vpack.c.b16 %v875, %v867
        %v1020 = vpack.c.b16 %v876, %v868
        %v1021 = vpack.c.b16 %v877, %v869
        %v1022 = vpack.c.b16 %v886, %v878
        %v1023 = vpack.c.b16 %v887, %v879
        %v1024 = vpack.c.b16 %v888, %v880
        %v1025 = vpack.c.b16 %v889, %v881
        %v1026 = vpack.c.b16 %v890, %v882
        %v1027 = vpack.c.b16 %v891, %v883
        %v1028 = vpack.c.b16 %v892, %v884
        %v1029 = vpack.c.b16 %v893, %v885
        %v1030 = vpack.c.b16 %v902, %v894
        %v1031 = vpack.c.b16 %v903, %v895
        %v1032 = vpack.c.b16 %v904, %v896
        %v1033 = vpack.c.b16 %v905, %v897
        %v1034 = vpack.c.b16 %v906, %v898
        %v1035 = vpack.c.b16 %v907, %v899
        %v1036 = vpack.c.b16 %v908, %v900
        %v1037 = vpack.c.b16 %v909, %v901
        %1166 = vmatpush.bf16.msra.mxu0 %v966
        %1167 = vmatpush.bf16.msra.mxu0 %v958
        %1168 = vmatpush.bf16.msra.mxu0 %v950
        %1169 = vmatpush.bf16.msra.mxu0 %v942
        %1170 = vmatpush.bf16.msra.mxu0 %v934
        %1171 = vmatpush.bf16.msra.mxu0 %v926
        %1172 = vmatpush.bf16.msra.mxu0 %v918
        %1173 = vmatpush.bf16.msra.mxu0 %v910
        %1174 = vmatmul.bf16.gmra.mxu0 %v380
        %v1175 = vpop.f32.mrf.mxu0
        %v1176 = vadd.f32 0.0, %v1175
        %v1177 = vpop.f32.mrf.mxu0
        %v1178 = vadd.f32 0.0, %v1177
        %1179 = vdwg.mxu0
        %1180 = vmatpush.bf16.msra.mxu0 %v1030
        %1181 = vmatpush.bf16.msra.mxu0 %v1022
        %1182 = vmatpush.bf16.msra.mxu0 %v1014
        %1183 = vmatpush.bf16.msra.mxu0 %v1006
        %1184 = vmatpush.bf16.msra.mxu0 %v998
        %1185 = vmatpush.bf16.msra.mxu0 %v990
        %1186 = vmatpush.bf16.msra.mxu0 %v982
        %1187 = vmatpush.bf16.msra.mxu0 %v974
        %1188 = vmatmul.bf16.gmra.mxu0 %v381
        %v1189 = vpop.f32.mrf.mxu0
        %v1190 = vadd.f32 %v1176, %v1189
        %v1191 = vpop.f32.mrf.mxu0
        %v1192 = vadd.f32 %v1178, %v1191
        %1193 = vdwg.mxu0
        %1194 = vmatpush.bf16.msra.mxu0 %v967
        %1195 = vmatpush.bf16.msra.mxu0 %v959
        %1196 = vmatpush.bf16.msra.mxu0 %v951
        %1197 = vmatpush.bf16.msra.mxu0 %v943
        %1198 = vmatpush.bf16.msra.mxu0 %v935
        %1199 = vmatpush.bf16.msra.mxu0 %v927
        %1200 = vmatpush.bf16.msra.mxu0 %v919
        %1201 = vmatpush.bf16.msra.mxu0 %v911
        %1202 = vmatmul.bf16.gmra.mxu0 %v380
        %v1203 = vpop.f32.mrf.mxu0
        %v1204 = vadd.f32 0.0, %v1203
        %v1205 = vpop.f32.mrf.mxu0
        %v1206 = vadd.f32 0.0, %v1205
        %1207 = vdwg.mxu0
        %1208 = vmatpush.bf16.msra.mxu0 %v1031
        %1209 = vmatpush.bf16.msra.mxu0 %v1023
        %1210 = vmatpush.bf16.msra.mxu0 %v1015
        %1211 = vmatpush.bf16.msra.mxu0 %v1007
        %1212 = vmatpush.bf16.msra.mxu0 %v999
        %1213 = vmatpush.bf16.msra.mxu0 %v991
        %1214 = vmatpush.bf16.msra.mxu0 %v983
        %1215 = vmatpush.bf16.msra.mxu0 %v975
        %1216 = vmatmul.bf16.gmra.mxu0 %v381
        %v1217 = vpop.f32.mrf.mxu0
        %v1218 = vadd.f32 %v1204, %v1217
        %v1219 = vpop.f32.mrf.mxu0
        %v1220 = vadd.f32 %v1206, %v1219
        %1221 = vdwg.mxu0
        %1222 = vmatpush.bf16.msra.mxu0 %v968
        %1223 = vmatpush.bf16.msra.mxu0 %v960
        %1224 = vmatpush.bf16.msra.mxu0 %v952
        %1225 = vmatpush.bf16.msra.mxu0 %v944
        %1226 = vmatpush.bf16.msra.mxu0 %v936
        %1227 = vmatpush.bf16.msra.mxu0 %v928
        %1228 = vmatpush.bf16.msra.mxu0 %v920
        %1229 = vmatpush.bf16.msra.mxu0 %v912
        %1230 = vmatmul.bf16.gmra.mxu0 %v380
        %v1231 = vpop.f32.mrf.mxu0
        %v1232 = vadd.f32 0.0, %v1231
        %v1233 = vpop.f32.mrf.mxu0
        %v1234 = vadd.f32 0.0, %v1233
        %1235 = vdwg.mxu0
        %1236 = vmatpush.bf16.msra.mxu0 %v1032
        %1237 = vmatpush.bf16.msra.mxu0 %v1024
        %1238 = vmatpush.bf16.msra.mxu0 %v1016
        %1239 = vmatpush.bf16.msra.mxu0 %v1008
        %1240 = vmatpush.bf16.msra.mxu0 %v1000
        %1241 = vmatpush.bf16.msra.mxu0 %v992
        %1242 = vmatpush.bf16.msra.mxu0 %v984
        %1243 = vmatpush.bf16.msra.mxu0 %v976
        %1244 = vmatmul.bf16.gmra.mxu0 %v381
        %v1245 = vpop.f32.mrf.mxu0
        %v1246 = vadd.f32 %v1232, %v1245
        %v1247 = vpop.f32.mrf.mxu0
        %v1248 = vadd.f32 %v1234, %v1247
        %1249 = vdwg.mxu0
        %1250 = vmatpush.bf16.msra.mxu0 %v969
        %1251 = vmatpush.bf16.msra.mxu0 %v961
        %1252 = vmatpush.bf16.msra.mxu0 %v953
        %1253 = vmatpush.bf16.msra.mxu0 %v945
        %1254 = vmatpush.bf16.msra.mxu0 %v937
        %1255 = vmatpush.bf16.msra.mxu0 %v929
        %1256 = vmatpush.bf16.msra.mxu0 %v921
        %1257 = vmatpush.bf16.msra.mxu0 %v913
        %1258 = vmatmul.bf16.gmra.mxu0 %v380
        %v1259 = vpop.f32.mrf.mxu0
        %v1260 = vadd.f32 0.0, %v1259
        %v1261 = vpop.f32.mrf.mxu0
        %v1262 = vadd.f32 0.0, %v1261
        %1263 = vdwg.mxu0
        %1264 = vmatpush.bf16.msra.mxu0 %v1033
        %1265 = vmatpush.bf16.msra.mxu0 %v1025
        %1266 = vmatpush.bf16.msra.mxu0 %v1017
        %1267 = vmatpush.bf16.msra.mxu0 %v1009
        %1268 = vmatpush.bf16.msra.mxu0 %v1001
        %1269 = vmatpush.bf16.msra.mxu0 %v993
        %1270 = vmatpush.bf16.msra.mxu0 %v985
        %1271 = vmatpush.bf16.msra.mxu0 %v977
        %1272 = vmatmul.bf16.gmra.mxu0 %v381
        %v1273 = vpop.f32.mrf.mxu0
        %v1274 = vadd.f32 %v1260, %v1273
        %v1275 = vpop.f32.mrf.mxu0
        %v1276 = vadd.f32 %v1262, %v1275
        %1277 = vdwg.mxu0
        %1278 = vmatpush.bf16.msra.mxu0 %v970
        %1279 = vmatpush.bf16.msra.mxu0 %v962
        %1280 = vmatpush.bf16.msra.mxu0 %v954
        %1281 = vmatpush.bf16.msra.mxu0 %v946
        %1282 = vmatpush.bf16.msra.mxu0 %v938
        %1283 = vmatpush.bf16.msra.mxu0 %v930
        %1284 = vmatpush.bf16.msra.mxu0 %v922
        %1285 = vmatpush.bf16.msra.mxu0 %v914
        %1286 = vmatmul.bf16.gmra.mxu0 %v380
        %v1287 = vpop.f32.mrf.mxu0
        %v1288 = vadd.f32 0.0, %v1287
        %v1289 = vpop.f32.mrf.mxu0
        %v1290 = vadd.f32 0.0, %v1289
        %1291 = vdwg.mxu0
        %1292 = vmatpush.bf16.msra.mxu0 %v1034
        %1293 = vmatpush.bf16.msra.mxu0 %v1026
        %1294 = vmatpush.bf16.msra.mxu0 %v1018
        %1295 = vmatpush.bf16.msra.mxu0 %v1010
        %1296 = vmatpush.bf16.msra.mxu0 %v1002
        %1297 = vmatpush.bf16.msra.mxu0 %v994
        %1298 = vmatpush.bf16.msra.mxu0 %v986
        %1299 = vmatpush.bf16.msra.mxu0 %v978
        %1300 = vmatmul.bf16.gmra.mxu0 %v381
        %v1301 = vpop.f32.mrf.mxu0
        %v1302 = vadd.f32 %v1288, %v1301
        %v1303 = vpop.f32.mrf.mxu0
        %v1304 = vadd.f32 %v1290, %v1303
        %1305 = vdwg.mxu0
        %1306 = vmatpush.bf16.msra.mxu0 %v971
        %1307 = vmatpush.bf16.msra.mxu0 %v963
        %1308 = vmatpush.bf16.msra.mxu0 %v955
        %1309 = vmatpush.bf16.msra.mxu0 %v947
        %1310 = vmatpush.bf16.msra.mxu0 %v939
        %1311 = vmatpush.bf16.msra.mxu0 %v931
        %1312 = vmatpush.bf16.msra.mxu0 %v923
        %1313 = vmatpush.bf16.msra.mxu0 %v915
        %1314 = vmatmul.bf16.gmra.mxu0 %v380
        %v1315 = vpop.f32.mrf.mxu0
        %v1316 = vadd.f32 0.0, %v1315
        %v1317 = vpop.f32.mrf.mxu0
        %v1318 = vadd.f32 0.0, %v1317
        %1319 = vdwg.mxu0
        %1320 = vmatpush.bf16.msra.mxu0 %v1035
        %1321 = vmatpush.bf16.msra.mxu0 %v1027
        %1322 = vmatpush.bf16.msra.mxu0 %v1019
        %1323 = vmatpush.bf16.msra.mxu0 %v1011
        %1324 = vmatpush.bf16.msra.mxu0 %v1003
        %1325 = vmatpush.bf16.msra.mxu0 %v995
        %1326 = vmatpush.bf16.msra.mxu0 %v987
        %1327 = vmatpush.bf16.msra.mxu0 %v979
        %1328 = vmatmul.bf16.gmra.mxu0 %v381
        %v1329 = vpop.f32.mrf.mxu0
        %v1330 = vadd.f32 %v1316, %v1329
        %v1331 = vpop.f32.mrf.mxu0
        %v1332 = vadd.f32 %v1318, %v1331
        %1333 = vdwg.mxu0
        %1334 = vmatpush.bf16.msra.mxu0 %v972
        %1335 = vmatpush.bf16.msra.mxu0 %v964
        %1336 = vmatpush.bf16.msra.mxu0 %v956
        %1337 = vmatpush.bf16.msra.mxu0 %v948
        %1338 = vmatpush.bf16.msra.mxu0 %v940
        %1339 = vmatpush.bf16.msra.mxu0 %v932
        %1340 = vmatpush.bf16.msra.mxu0 %v924
        %1341 = vmatpush.bf16.msra.mxu0 %v916
        %1342 = vmatmul.bf16.gmra.mxu0 %v380
        %v1343 = vpop.f32.mrf.mxu0
        %v1344 = vadd.f32 0.0, %v1343
        %v1345 = vpop.f32.mrf.mxu0
        %v1346 = vadd.f32 0.0, %v1345
        %1347 = vdwg.mxu0
        %1348 = vmatpush.bf16.msra.mxu0 %v1036
        %1349 = vmatpush.bf16.msra.mxu0 %v1028
        %1350 = vmatpush.bf16.msra.mxu0 %v1020
        %1351 = vmatpush.bf16.msra.mxu0 %v1012
        %1352 = vmatpush.bf16.msra.mxu0 %v1004
        %1353 = vmatpush.bf16.msra.mxu0 %v996
        %1354 = vmatpush.bf16.msra.mxu0 %v988
        %1355 = vmatpush.bf16.msra.mxu0 %v980
        %1356 = vmatmul.bf16.gmra.mxu0 %v381
        %v1357 = vpop.f32.mrf.mxu0
        %v1358 = vadd.f32 %v1344, %v1357
        %v1359 = vpop.f32.mrf.mxu0
        %v1360 = vadd.f32 %v1346, %v1359
        %1361 = vdwg.mxu0
        %1362 = vmatpush.bf16.msra.mxu0 %v973
        %1363 = vmatpush.bf16.msra.mxu0 %v965
        %1364 = vmatpush.bf16.msra.mxu0 %v957
        %1365 = vmatpush.bf16.msra.mxu0 %v949
        %1366 = vmatpush.bf16.msra.mxu0 %v941
        %1367 = vmatpush.bf16.msra.mxu0 %v933
        %1368 = vmatpush.bf16.msra.mxu0 %v925
        %1369 = vmatpush.bf16.msra.mxu0 %v917
        %1370 = vmatmul.bf16.gmra.mxu0 %v380
        %v1371 = vpop.f32.mrf.mxu0
        %v1372 = vadd.f32 0.0, %v1371
        %v1373 = vpop.f32.mrf.mxu0
        %v1374 = vadd.f32 0.0, %v1373
        %1375 = vdwg.mxu0
        %1376 = vmatpush.bf16.msra.mxu0 %v1037
        %1377 = vmatpush.bf16.msra.mxu0 %v1029
        %1378 = vmatpush.bf16.msra.mxu0 %v1021
        %1379 = vmatpush.bf16.msra.mxu0 %v1013
        %1380 = vmatpush.bf16.msra.mxu0 %v1005
        %1381 = vmatpush.bf16.msra.mxu0 %v997
        %1382 = vmatpush.bf16.msra.mxu0 %v989
        %1383 = vmatpush.bf16.msra.mxu0 %v981
        %1384 = vmatmul.bf16.gmra.mxu0 %v381
        %v1385 = vpop.f32.mrf.mxu0
        %v1386 = vadd.f32 %v1372, %v1385
        %v1387 = vpop.f32.mrf.mxu0
        %v1388 = vadd.f32 %v1374, %v1387
        %1389 = vdwg.mxu0
        %v1390 = vadd.f32 %v382, %v1190
        %v1391 = vadd.f32 %v383, %v1218
        %v1392 = vadd.f32 %v384, %v1246
        %v1393 = vadd.f32 %v385, %v1274
        %v1394 = vadd.f32 %v386, %v1302
        %v1395 = vadd.f32 %v387, %v1330
        %v1396 = vadd.f32 %v388, %v1358
        %v1397 = vadd.f32 %v389, %v1386
        %v1398 = vadd.f32 %v390, %v1192
        %v1399 = vadd.f32 %v391, %v1220
        %v1400 = vadd.f32 %v392, %v1248
        %v1401 = vadd.f32 %v393, %v1276
        %v1402 = vadd.f32 %v394, %v1304
        %v1403 = vadd.f32 %v395, %v1332
        %v1404 = vadd.f32 %v396, %v1360
        %v1405 = vadd.f32 %v397, %v1388
        %1406 = vst [vmem:[#allocation2] sm:$0xff] %v1390
        %1407 = vst [vmem:[#allocation2 + $0x8] sm:$0xff] %v1391
        %1408 = vst [vmem:[#allocation2 + $0x10] sm:$0xff] %v1392
        %1409 = vst [vmem:[#allocation2 + $0x18] sm:$0xff] %v1393
        %1410 = vst [vmem:[#allocation2 + $0x20] sm:$0xff] %v1394
        %1411 = vst [vmem:[#allocation2 + $0x28] sm:$0xff] %v1395
        %1412 = vst [vmem:[#allocation2 + $0x30] sm:$0xff] %v1396
        %1413 = vst [vmem:[#allocation2 + $0x38] sm:$0xff] %v1397
        %1414 = vst [vmem:[#allocation2 + $0x40] sm:$0xff] %v1398
        %1415 = vst [vmem:[#allocation2 + $0x48] sm:$0xff] %v1399
        %1416 = vst [vmem:[#allocation2 + $0x50] sm:$0xff] %v1400
        %1417 = vst [vmem:[#allocation2 + $0x58] sm:$0xff] %v1401
        %1418 = vst [vmem:[#allocation2 + $0x60] sm:$0xff] %v1402
        %1419 = vst [vmem:[#allocation2 + $0x68] sm:$0xff] %v1403
        %1420 = vst [vmem:[#allocation2 + $0x70] sm:$0xff] %v1404
        %1421 = vst [vmem:[#allocation2 + $0x78] sm:$0xff] %v1405
        %p1422 = scmp.eq.s32.totalorder %s28, 3
        // Predicated region
        $region65: #{unispeech_classification_head.1} parent=39 // pred_check
          %p1423 = pneg %p1422
        $region66: #{unispeech_classification_head.1} parent=39 // pred_check_branch
          %1425 = sbr.rel (%p1423) target = $region68
        $region67: #{unispeech_classification_head.1} parent=39 // pred_region
          %v1426 = vld [vmem:[#allocation2] sm:$0xff]
          %v1427 = vld [vmem:[#allocation2 + $0x8] sm:$0xff]
          %v1428 = vld [vmem:[#allocation2 + $0x10] sm:$0xff]
          %v1429 = vld [vmem:[#allocation2 + $0x18] sm:$0xff]
          %v1430 = vld [vmem:[#allocation2 + $0x20] sm:$0xff]
          %v1431 = vld [vmem:[#allocation2 + $0x28] sm:$0xff]
          %v1432 = vld [vmem:[#allocation2 + $0x30] sm:$0xff]
          %v1433 = vld [vmem:[#allocation2 + $0x38] sm:$0xff]
          %v1434 = vld [vmem:[#allocation2 + $0x40] sm:$0xff]
          %v1435 = vld [vmem:[#allocation2 + $0x48] sm:$0xff]
          %v1436 = vld [vmem:[#allocation2 + $0x50] sm:$0xff]
          %v1437 = vld [vmem:[#allocation2 + $0x58] sm:$0xff]
          %v1438 = vld [vmem:[#allocation2 + $0x60] sm:$0xff]
          %v1439 = vld [vmem:[#allocation2 + $0x68] sm:$0xff]
          %v1440 = vld [vmem:[#allocation2 + $0x70] sm:$0xff]
          %v1441 = vld [vmem:[#allocation2 + $0x78] sm:$0xff]
          %v1442 = vld [vmem:[#allocation7] sm:$0xff]
          %v1444 = vperm.slane %v1442, 0
          %v1445 = vperm.slane %v1442, 1
          %v1446 = vperm.slane %v1442, 2
          %v1447 = vperm.slane %v1442, 3
          %v1448 = vperm.slane %v1442, 4
          %v1449 = vperm.slane %v1442, 5
          %v1450 = vperm.slane %v1442, 6
          %v1451 = vperm.slane %v1442, 7
          %v1460 = vadd.f32 %v1426, %v1444
          %v1461 = vadd.f32 %v1427, %v1445
          %v1462 = vadd.f32 %v1428, %v1446
          %v1463 = vadd.f32 %v1429, %v1447
          %v1464 = vadd.f32 %v1430, %v1448
          %v1465 = vadd.f32 %v1431, %v1449
          %v1466 = vadd.f32 %v1432, %v1450
          %v1467 = vadd.f32 %v1433, %v1451
          %v1468 = vadd.f32 %v1434, %v1444
          %v1469 = vadd.f32 %v1435, %v1445
          %v1470 = vadd.f32 %v1436, %v1446
          %v1471 = vadd.f32 %v1437, %v1447
          %v1472 = vadd.f32 %v1438, %v1448
          %v1473 = vadd.f32 %v1439, %v1449
          %v1474 = vadd.f32 %v1440, %v1450
          %v1475 = vadd.f32 %v1441, %v1451
          %v1476 = vtanh.pop %v1460
          %v1477 = vtanh.pop %v1461
          %v1478 = vtanh.pop %v1462
          %v1479 = vtanh.pop %v1463
          %v1480 = vtanh.pop %v1464
          %v1481 = vtanh.pop %v1465
          %v1482 = vtanh.pop %v1466
          %v1483 = vtanh.pop %v1467
          %v1484 = vtanh.pop %v1468
          %v1485 = vtanh.pop %v1469
          %v1486 = vtanh.pop %v1470
          %v1487 = vtanh.pop %v1471
          %v1488 = vtanh.pop %v1472
          %v1489 = vtanh.pop %v1473
          %v1490 = vtanh.pop %v1474
          %v1491 = vtanh.pop %v1475
          %v1492 = vpack.c.bf16 %v1484, %v1476
          %v1493 = vpack.c.bf16 %v1485, %v1477
          %v1494 = vpack.c.bf16 %v1486, %v1478
          %v1495 = vpack.c.bf16 %v1487, %v1479
          %v1496 = vpack.c.bf16 %v1488, %v1480
          %v1497 = vpack.c.bf16 %v1489, %v1481
          %v1498 = vpack.c.bf16 %v1490, %v1482
          %v1499 = vpack.c.bf16 %v1491, %v1483
          %v1500 = vld [vmem:[#allocation8] sm:$0xf]
          %v1501 = vld [vmem:[#allocation8 + $0x4] sm:$0xf]
          %v1502 = vld [vmem:[#allocation8 + $0x8] sm:$0xf]
          %v1503 = vld [vmem:[#allocation8 + $0xc] sm:$0xf]
          %v1504 = vld [vmem:[#allocation8 + $0x10] sm:$0xf]
          %v1505 = vld [vmem:[#allocation8 + $0x14] sm:$0xf]
          %v1506 = vld [vmem:[#allocation8 + $0x18] sm:$0xf]
          %v1507 = vld [vmem:[#allocation8 + $0x1c] sm:$0xf]
          %v1508 = vld [vmem:[#allocation8 + $0x20] sm:$0xf]
          %v1509 = vld [vmem:[#allocation8 + $0x24] sm:$0xf]
          %v1510 = vld [vmem:[#allocation8 + $0x28] sm:$0xf]
          %v1511 = vld [vmem:[#allocation8 + $0x2c] sm:$0xf]
          %v1512 = vld [vmem:[#allocation8 + $0x30] sm:$0xf]
          %v1513 = vld [vmem:[#allocation8 + $0x34] sm:$0xf]
          %v1514 = vld [vmem:[#allocation8 + $0x38] sm:$0xf]
          %v1515 = vld [vmem:[#allocation8 + $0x3c] sm:$0xf]
          %v1516 = vld [vmem:[#allocation8 + $0x40] sm:$0xf]
          %v1517 = vld [vmem:[#allocation8 + $0x44] sm:$0xf]
          %v1518 = vld [vmem:[#allocation8 + $0x48] sm:$0xf]
          %v1519 = vld [vmem:[#allocation8 + $0x4c] sm:$0xf]
          %v1520 = vld [vmem:[#allocation8 + $0x50] sm:$0xf]
          %v1521 = vld [vmem:[#allocation8 + $0x54] sm:$0xf]
          %v1522 = vld [vmem:[#allocation8 + $0x58] sm:$0xf]
          %v1523 = vld [vmem:[#allocation8 + $0x5c] sm:$0xf]
          %v1524 = vld [vmem:[#allocation8 + $0x60] sm:$0xf]
          %v1525 = vld [vmem:[#allocation8 + $0x64] sm:$0xf]
          %v1526 = vld [vmem:[#allocation8 + $0x68] sm:$0xf]
          %v1527 = vld [vmem:[#allocation8 + $0x6c] sm:$0xf]
          %v1528 = vld [vmem:[#allocation8 + $0x70] sm:$0xf]
          %v1529 = vld [vmem:[#allocation8 + $0x74] sm:$0xf]
          %v1530 = vld [vmem:[#allocation8 + $0x78] sm:$0xf]
          %v1531 = vld [vmem:[#allocation8 + $0x7c] sm:$0xf]
          %v1532 = vld [vmem:[#allocation8 + $0x80] sm:$0xf]
          %v1533 = vld [vmem:[#allocation8 + $0x84] sm:$0xf]
          %v1534 = vld [vmem:[#allocation8 + $0x88] sm:$0xf]
          %v1535 = vld [vmem:[#allocation8 + $0x8c] sm:$0xf]
          %v1536 = vld [vmem:[#allocation8 + $0x90] sm:$0xf]
          %v1537 = vld [vmem:[#allocation8 + $0x94] sm:$0xf]
          %v1538 = vld [vmem:[#allocation8 + $0x98] sm:$0xf]
          %v1539 = vld [vmem:[#allocation8 + $0x9c] sm:$0xf]
          %v1540 = vld [vmem:[#allocation8 + $0xa0] sm:$0xf]
          %v1541 = vld [vmem:[#allocation8 + $0xa4] sm:$0xf]
          %v1542 = vld [vmem:[#allocation8 + $0xa8] sm:$0xf]
          %v1543 = vld [vmem:[#allocation8 + $0xac] sm:$0xf]
          %v1544 = vld [vmem:[#allocation8 + $0xb0] sm:$0xf]
          %v1545 = vld [vmem:[#allocation8 + $0xb4] sm:$0xf]
          %v1546 = vld [vmem:[#allocation8 + $0xb8] sm:$0xf]
          %v1547 = vld [vmem:[#allocation8 + $0xbc] sm:$0xf]
          %v1548 = vld [vmem:[#allocation8 + $0xc0] sm:$0xf]
          %v1549 = vld [vmem:[#allocation8 + $0xc4] sm:$0xf]
          %v1550 = vld [vmem:[#allocation8 + $0xc8] sm:$0xf]
          %v1551 = vld [vmem:[#allocation8 + $0xcc] sm:$0xf]
          %v1552 = vld [vmem:[#allocation8 + $0xd0] sm:$0xf]
          %v1553 = vld [vmem:[#allocation8 + $0xd4] sm:$0xf]
          %v1554 = vld [vmem:[#allocation8 + $0xd8] sm:$0xf]
          %v1555 = vld [vmem:[#allocation8 + $0xdc] sm:$0xf]
          %v1556 = vld [vmem:[#allocation8 + $0xe0] sm:$0xf]
          %v1557 = vld [vmem:[#allocation8 + $0xe4] sm:$0xf]
          %v1558 = vld [vmem:[#allocation8 + $0xe8] sm:$0xf]
          %v1559 = vld [vmem:[#allocation8 + $0xec] sm:$0xf]
          %v1560 = vld [vmem:[#allocation8 + $0xf0] sm:$0xf]
          %v1561 = vld [vmem:[#allocation8 + $0xf4] sm:$0xf]
          %v1562 = vld [vmem:[#allocation8 + $0xf8] sm:$0xf]
          %v1563 = vld [vmem:[#allocation8 + $0xfc] sm:$0xf]
          %v1564 = vld [vmem:[#allocation8 + $0x100] sm:$0xf]
          %v1565 = vld [vmem:[#allocation8 + $0x104] sm:$0xf]
          %v1566 = vld [vmem:[#allocation8 + $0x108] sm:$0xf]
          %v1567 = vld [vmem:[#allocation8 + $0x10c] sm:$0xf]
          %v1568 = vld [vmem:[#allocation8 + $0x110] sm:$0xf]
          %v1569 = vld [vmem:[#allocation8 + $0x114] sm:$0xf]
          %v1570 = vld [vmem:[#allocation8 + $0x118] sm:$0xf]
          %v1571 = vld [vmem:[#allocation8 + $0x11c] sm:$0xf]
          %v1572 = vld [vmem:[#allocation8 + $0x120] sm:$0xf]
          %v1573 = vld [vmem:[#allocation8 + $0x124] sm:$0xf]
          %v1574 = vld [vmem:[#allocation8 + $0x128] sm:$0xf]
          %v1575 = vld [vmem:[#allocation8 + $0x12c] sm:$0xf]
          %v1576 = vld [vmem:[#allocation8 + $0x130] sm:$0xf]
          %v1577 = vld [vmem:[#allocation8 + $0x134] sm:$0xf]
          %v1578 = vld [vmem:[#allocation8 + $0x138] sm:$0xf]
          %v1579 = vld [vmem:[#allocation8 + $0x13c] sm:$0xf]
          %v1580 = vld [vmem:[#allocation8 + $0x140] sm:$0xf]
          %v1581 = vld [vmem:[#allocation8 + $0x144] sm:$0xf]
          %v1582 = vld [vmem:[#allocation8 + $0x148] sm:$0xf]
          %v1583 = vld [vmem:[#allocation8 + $0x14c] sm:$0xf]
          %v1584 = vld [vmem:[#allocation8 + $0x150] sm:$0xf]
          %v1585 = vld [vmem:[#allocation8 + $0x154] sm:$0xf]
          %v1586 = vld [vmem:[#allocation8 + $0x158] sm:$0xf]
          %v1587 = vld [vmem:[#allocation8 + $0x15c] sm:$0xf]
          %v1588 = vld [vmem:[#allocation8 + $0x160] sm:$0xf]
          %v1589 = vld [vmem:[#allocation8 + $0x164] sm:$0xf]
          %v1590 = vld [vmem:[#allocation8 + $0x168] sm:$0xf]
          %v1591 = vld [vmem:[#allocation8 + $0x16c] sm:$0xf]
          %v1592 = vld [vmem:[#allocation8 + $0x170] sm:$0xf]
          %v1593 = vld [vmem:[#allocation8 + $0x174] sm:$0xf]
          %v1594 = vld [vmem:[#allocation8 + $0x178] sm:$0xf]
          %v1595 = vld [vmem:[#allocation8 + $0x17c] sm:$0xf]
          %v1596 = vld [vmem:[#allocation8 + $0x180] sm:$0xf]
          %v1597 = vld [vmem:[#allocation8 + $0x184] sm:$0xf]
          %v1598 = vld [vmem:[#allocation8 + $0x188] sm:$0xf]
          %v1599 = vld [vmem:[#allocation8 + $0x18c] sm:$0xf]
          %v1600 = vld [vmem:[#allocation8 + $0x190] sm:$0xf]
          %v1601 = vld [vmem:[#allocation8 + $0x194] sm:$0xf]
          %v1602 = vld [vmem:[#allocation8 + $0x198] sm:$0xf]
          %v1603 = vld [vmem:[#allocation8 + $0x19c] sm:$0xf]
          %v1604 = vld [vmem:[#allocation8 + $0x1a0] sm:$0xf]
          %v1605 = vld [vmem:[#allocation8 + $0x1a4] sm:$0xf]
          %v1606 = vld [vmem:[#allocation8 + $0x1a8] sm:$0xf]
          %v1607 = vld [vmem:[#allocation8 + $0x1ac] sm:$0xf]
          %v1608 = vld [vmem:[#allocation8 + $0x1b0] sm:$0xf]
          %v1609 = vld [vmem:[#allocation8 + $0x1b4] sm:$0xf]
          %v1610 = vld [vmem:[#allocation8 + $0x1b8] sm:$0xf]
          %v1611 = vld [vmem:[#allocation8 + $0x1bc] sm:$0xf]
          %v1612 = vld [vmem:[#allocation8 + $0x1c0] sm:$0xf]
          %v1613 = vld [vmem:[#allocation8 + $0x1c4] sm:$0xf]
          %v1614 = vld [vmem:[#allocation8 + $0x1c8] sm:$0xf]
          %v1615 = vld [vmem:[#allocation8 + $0x1cc] sm:$0xf]
          %v1616 = vld [vmem:[#allocation8 + $0x1d0] sm:$0xf]
          %v1617 = vld [vmem:[#allocation8 + $0x1d4] sm:$0xf]
          %v1618 = vld [vmem:[#allocation8 + $0x1d8] sm:$0xf]
          %v1619 = vld [vmem:[#allocation8 + $0x1dc] sm:$0xf]
          %v1620 = vld [vmem:[#allocation8 + $0x1e0] sm:$0xf]
          %v1621 = vld [vmem:[#allocation8 + $0x1e4] sm:$0xf]
          %v1622 = vld [vmem:[#allocation8 + $0x1e8] sm:$0xf]
          %v1623 = vld [vmem:[#allocation8 + $0x1ec] sm:$0xf]
          %v1624 = vld [vmem:[#allocation8 + $0x1f0] sm:$0xf]
          %v1625 = vld [vmem:[#allocation8 + $0x1f4] sm:$0xf]
          %v1626 = vld [vmem:[#allocation8 + $0x1f8] sm:$0xf]
          %v1627 = vld [vmem:[#allocation8 + $0x1fc] sm:$0xf]
          %v1628 = vld [vmem:[#allocation10] sm:$0x1]
          %v1630 = vperm.slane %v1628, 0
          %v1760 = vunpack.c.l.b16 %v1500
          %v1761 = vunpack.c.l.b16 %v1501
          %v1762 = vunpack.c.l.b16 %v1502
          %v1763 = vunpack.c.l.b16 %v1503
          %v1764 = vunpack.c.l.b16 %v1504
          %v1765 = vunpack.c.l.b16 %v1505
          %v1766 = vunpack.c.l.b16 %v1506
          %v1767 = vunpack.c.l.b16 %v1507
          %v1768 = vunpack.c.l.b16 %v1508
          %v1769 = vunpack.c.l.b16 %v1509
          %v1770 = vunpack.c.l.b16 %v1510
          %v1771 = vunpack.c.l.b16 %v1511
          %v1772 = vunpack.c.l.b16 %v1512
          %v1773 = vunpack.c.l.b16 %v1513
          %v1774 = vunpack.c.l.b16 %v1514
          %v1775 = vunpack.c.l.b16 %v1515
          %v1776 = vunpack.c.l.b16 %v1516
          %v1777 = vunpack.c.l.b16 %v1517
          %v1778 = vunpack.c.l.b16 %v1518
          %v1779 = vunpack.c.l.b16 %v1519
          %v1780 = vunpack.c.l.b16 %v1520
          %v1781 = vunpack.c.l.b16 %v1521
          %v1782 = vunpack.c.l.b16 %v1522
          %v1783 = vunpack.c.l.b16 %v1523
          %v1784 = vunpack.c.l.b16 %v1524
          %v1785 = vunpack.c.l.b16 %v1525
          %v1786 = vunpack.c.l.b16 %v1526
          %v1787 = vunpack.c.l.b16 %v1527
          %v1788 = vunpack.c.l.b16 %v1528
          %v1789 = vunpack.c.l.b16 %v1529
          %v1790 = vunpack.c.l.b16 %v1530
          %v1791 = vunpack.c.l.b16 %v1531
          %v1792 = vunpack.c.l.b16 %v1532
          %v1793 = vunpack.c.l.b16 %v1533
          %v1794 = vunpack.c.l.b16 %v1534
          %v1795 = vunpack.c.l.b16 %v1535
          %v1796 = vunpack.c.l.b16 %v1536
          %v1797 = vunpack.c.l.b16 %v1537
          %v1798 = vunpack.c.l.b16 %v1538
          %v1799 = vunpack.c.l.b16 %v1539
          %v1800 = vunpack.c.l.b16 %v1540
          %v1801 = vunpack.c.l.b16 %v1541
          %v1802 = vunpack.c.l.b16 %v1542
          %v1803 = vunpack.c.l.b16 %v1543
          %v1804 = vunpack.c.l.b16 %v1544
          %v1805 = vunpack.c.l.b16 %v1545
          %v1806 = vunpack.c.l.b16 %v1546
          %v1807 = vunpack.c.l.b16 %v1547
          %v1808 = vunpack.c.l.b16 %v1548
          %v1809 = vunpack.c.l.b16 %v1549
          %v1810 = vunpack.c.l.b16 %v1550
          %v1811 = vunpack.c.l.b16 %v1551
          %v1812 = vunpack.c.l.b16 %v1552
          %v1813 = vunpack.c.l.b16 %v1553
          %v1814 = vunpack.c.l.b16 %v1554
          %v1815 = vunpack.c.l.b16 %v1555
          %v1816 = vunpack.c.l.b16 %v1556
          %v1817 = vunpack.c.l.b16 %v1557
          %v1818 = vunpack.c.l.b16 %v1558
          %v1819 = vunpack.c.l.b16 %v1559
          %v1820 = vunpack.c.l.b16 %v1560
          %v1821 = vunpack.c.l.b16 %v1561
          %v1822 = vunpack.c.l.b16 %v1562
          %v1823 = vunpack.c.l.b16 %v1563
          %v1824 = vunpack.c.l.b16 %v1564
          %v1825 = vunpack.c.l.b16 %v1565
          %v1826 = vunpack.c.l.b16 %v1566
          %v1827 = vunpack.c.l.b16 %v1567
          %v1828 = vunpack.c.l.b16 %v1568
          %v1829 = vunpack.c.l.b16 %v1569
          %v1830 = vunpack.c.l.b16 %v1570
          %v1831 = vunpack.c.l.b16 %v1571
          %v1832 = vunpack.c.l.b16 %v1572
          %v1833 = vunpack.c.l.b16 %v1573
          %v1834 = vunpack.c.l.b16 %v1574
          %v1835 = vunpack.c.l.b16 %v1575
          %v1836 = vunpack.c.l.b16 %v1576
          %v1837 = vunpack.c.l.b16 %v1577
          %v1838 = vunpack.c.l.b16 %v1578
          %v1839 = vunpack.c.l.b16 %v1579
          %v1840 = vunpack.c.l.b16 %v1580
          %v1841 = vunpack.c.l.b16 %v1581
          %v1842 = vunpack.c.l.b16 %v1582
          %v1843 = vunpack.c.l.b16 %v1583
          %v1844 = vunpack.c.l.b16 %v1584
          %v1845 = vunpack.c.l.b16 %v1585
          %v1846 = vunpack.c.l.b16 %v1586
          %v1847 = vunpack.c.l.b16 %v1587
          %v1848 = vunpack.c.l.b16 %v1588
          %v1849 = vunpack.c.l.b16 %v1589
          %v1850 = vunpack.c.l.b16 %v1590
          %v1851 = vunpack.c.l.b16 %v1591
          %v1852 = vunpack.c.l.b16 %v1592
          %v1853 = vunpack.c.l.b16 %v1593
          %v1854 = vunpack.c.l.b16 %v1594
          %v1855 = vunpack.c.l.b16 %v1595
          %v1856 = vunpack.c.l.b16 %v1596
          %v1857 = vunpack.c.l.b16 %v1597
          %v1858 = vunpack.c.l.b16 %v1598
          %v1859 = vunpack.c.l.b16 %v1599
          %v1860 = vunpack.c.l.b16 %v1600
          %v1861 = vunpack.c.l.b16 %v1601
          %v1862 = vunpack.c.l.b16 %v1602
          %v1863 = vunpack.c.l.b16 %v1603
          %v1864 = vunpack.c.l.b16 %v1604
          %v1865 = vunpack.c.l.b16 %v1605
          %v1866 = vunpack.c.l.b16 %v1606
          %v1867 = vunpack.c.l.b16 %v1607
          %v1868 = vunpack.c.l.b16 %v1608
          %v1869 = vunpack.c.l.b16 %v1609
          %v1870 = vunpack.c.l.b16 %v1610
          %v1871 = vunpack.c.l.b16 %v1611
          %v1872 = vunpack.c.l.b16 %v1612
          %v1873 = vunpack.c.l.b16 %v1613
          %v1874 = vunpack.c.l.b16 %v1614
          %v1875 = vunpack.c.l.b16 %v1615
          %v1876 = vunpack.c.l.b16 %v1616
          %v1877 = vunpack.c.l.b16 %v1617
          %v1878 = vunpack.c.l.b16 %v1618
          %v1879 = vunpack.c.l.b16 %v1619
          %v1880 = vunpack.c.l.b16 %v1620
          %v1881 = vunpack.c.l.b16 %v1621
          %v1882 = vunpack.c.l.b16 %v1622
          %v1883 = vunpack.c.l.b16 %v1623
          %v1884 = vunpack.c.l.b16 %v1624
          %v1885 = vunpack.c.l.b16 %v1625
          %v1886 = vunpack.c.l.b16 %v1626
          %v1887 = vunpack.c.l.b16 %v1627
          %v1888 = vpack.c.b16 %v1761, %v1760
          %v1889 = vpack.c.b16 %v1763, %v1762
          %v1890 = vpack.c.b16 %v1765, %v1764
          %v1891 = vpack.c.b16 %v1767, %v1766
          %v1892 = vpack.c.b16 %v1769, %v1768
          %v1893 = vpack.c.b16 %v1771, %v1770
          %v1894 = vpack.c.b16 %v1773, %v1772
          %v1895 = vpack.c.b16 %v1775, %v1774
          %v1896 = vpack.c.b16 %v1777, %v1776
          %v1897 = vpack.c.b16 %v1779, %v1778
          %v1898 = vpack.c.b16 %v1781, %v1780
          %v1899 = vpack.c.b16 %v1783, %v1782
          %v1900 = vpack.c.b16 %v1785, %v1784
          %v1901 = vpack.c.b16 %v1787, %v1786
          %v1902 = vpack.c.b16 %v1789, %v1788
          %v1903 = vpack.c.b16 %v1791, %v1790
          %v1904 = vpack.c.b16 %v1793, %v1792
          %v1905 = vpack.c.b16 %v1795, %v1794
          %v1906 = vpack.c.b16 %v1797, %v1796
          %v1907 = vpack.c.b16 %v1799, %v1798
          %v1908 = vpack.c.b16 %v1801, %v1800
          %v1909 = vpack.c.b16 %v1803, %v1802
          %v1910 = vpack.c.b16 %v1805, %v1804
          %v1911 = vpack.c.b16 %v1807, %v1806
          %v1912 = vpack.c.b16 %v1809, %v1808
          %v1913 = vpack.c.b16 %v1811, %v1810
          %v1914 = vpack.c.b16 %v1813, %v1812
          %v1915 = vpack.c.b16 %v1815, %v1814
          %v1916 = vpack.c.b16 %v1817, %v1816
          %v1917 = vpack.c.b16 %v1819, %v1818
          %v1918 = vpack.c.b16 %v1821, %v1820
          %v1919 = vpack.c.b16 %v1823, %v1822
          %v1920 = vpack.c.b16 %v1825, %v1824
          %v1921 = vpack.c.b16 %v1827, %v1826
          %v1922 = vpack.c.b16 %v1829, %v1828
          %v1923 = vpack.c.b16 %v1831, %v1830
          %v1924 = vpack.c.b16 %v1833, %v1832
          %v1925 = vpack.c.b16 %v1835, %v1834
          %v1926 = vpack.c.b16 %v1837, %v1836
          %v1927 = vpack.c.b16 %v1839, %v1838
          %v1928 = vpack.c.b16 %v1841, %v1840
          %v1929 = vpack.c.b16 %v1843, %v1842
          %v1930 = vpack.c.b16 %v1845, %v1844
          %v1931 = vpack.c.b16 %v1847, %v1846
          %v1932 = vpack.c.b16 %v1849, %v1848
          %v1933 = vpack.c.b16 %v1851, %v1850
          %v1934 = vpack.c.b16 %v1853, %v1852
          %v1935 = vpack.c.b16 %v1855, %v1854
          %v1936 = vpack.c.b16 %v1857, %v1856
          %v1937 = vpack.c.b16 %v1859, %v1858
          %v1938 = vpack.c.b16 %v1861, %v1860
          %v1939 = vpack.c.b16 %v1863, %v1862
          %v1940 = vpack.c.b16 %v1865, %v1864
          %v1941 = vpack.c.b16 %v1867, %v1866
          %v1942 = vpack.c.b16 %v1869, %v1868
          %v1943 = vpack.c.b16 %v1871, %v1870
          %v1944 = vpack.c.b16 %v1873, %v1872
          %v1945 = vpack.c.b16 %v1875, %v1874
          %v1946 = vpack.c.b16 %v1877, %v1876
          %v1947 = vpack.c.b16 %v1879, %v1878
          %v1948 = vpack.c.b16 %v1881, %v1880
          %v1949 = vpack.c.b16 %v1883, %v1882
          %v1950 = vpack.c.b16 %v1885, %v1884
          %v1951 = vpack.c.b16 %v1887, %v1886
          %2016 = vmatpush.bf16.msra.mxu0 %v1895
          %2017 = vmatpush.bf16.msra.mxu0 %v1894
          %2018 = vmatpush.bf16.msra.mxu0 %v1893
          %2019 = vmatpush.bf16.msra.mxu0 %v1892
          %2020 = vmatpush.bf16.msra.mxu0 %v1891
          %2021 = vmatpush.bf16.msra.mxu0 %v1890
          %2022 = vmatpush.bf16.msra.mxu0 %v1889
          %2023 = vmatpush.bf16.msra.mxu0 %v1888
          %2024 = vmatmul.bf16.gmra.mxu0 %v1492
          %v2025 = vpop.f32.mrf.mxu0
          %v2026 = vadd.f32 %v1630, %v2025
          %v2027 = vpop.f32.mrf.mxu0
          %v2028 = vadd.f32 %v1630, %v2027
          %2029 = vdwg.mxu0
          %2030 = vmatpush.bf16.msra.mxu0 %v1903
          %2031 = vmatpush.bf16.msra.mxu0 %v1902
          %2032 = vmatpush.bf16.msra.mxu0 %v1901
          %2033 = vmatpush.bf16.msra.mxu0 %v1900
          %2034 = vmatpush.bf16.msra.mxu0 %v1899
          %2035 = vmatpush.bf16.msra.mxu0 %v1898
          %2036 = vmatpush.bf16.msra.mxu0 %v1897
          %2037 = vmatpush.bf16.msra.mxu0 %v1896
          %2038 = vmatmul.bf16.gmra.mxu0 %v1493
          %v2039 = vpop.f32.mrf.mxu0
          %v2040 = vadd.f32 %v2026, %v2039
          %v2041 = vpop.f32.mrf.mxu0
          %v2042 = vadd.f32 %v2028, %v2041
          %2043 = vdwg.mxu0
          %2044 = vmatpush.bf16.msra.mxu0 %v1911
          %2045 = vmatpush.bf16.msra.mxu0 %v1910
          %2046 = vmatpush.bf16.msra.mxu0 %v1909
          %2047 = vmatpush.bf16.msra.mxu0 %v1908
          %2048 = vmatpush.bf16.msra.mxu0 %v1907
          %2049 = vmatpush.bf16.msra.mxu0 %v1906
          %2050 = vmatpush.bf16.msra.mxu0 %v1905
          %2051 = vmatpush.bf16.msra.mxu0 %v1904
          %2052 = vmatmul.bf16.gmra.mxu0 %v1494
          %v2053 = vpop.f32.mrf.mxu0
          %v2054 = vadd.f32 %v2040, %v2053
          %v2055 = vpop.f32.mrf.mxu0
          %v2056 = vadd.f32 %v2042, %v2055
          %2057 = vdwg.mxu0
          %2058 = vmatpush.bf16.msra.mxu0 %v1919
          %2059 = vmatpush.bf16.msra.mxu0 %v1918
          %2060 = vmatpush.bf16.msra.mxu0 %v1917
          %2061 = vmatpush.bf16.msra.mxu0 %v1916
          %2062 = vmatpush.bf16.msra.mxu0 %v1915
          %2063 = vmatpush.bf16.msra.mxu0 %v1914
          %2064 = vmatpush.bf16.msra.mxu0 %v1913
          %2065 = vmatpush.bf16.msra.mxu0 %v1912
          %2066 = vmatmul.bf16.gmra.mxu0 %v1495
          %v2067 = vpop.f32.mrf.mxu0
          %v2068 = vadd.f32 %v2054, %v2067
          %v2069 = vpop.f32.mrf.mxu0
          %v2070 = vadd.f32 %v2056, %v2069
          %2071 = vdwg.mxu0
          %2072 = vmatpush.bf16.msra.mxu0 %v1927
          %2073 = vmatpush.bf16.msra.mxu0 %v1926
          %2074 = vmatpush.bf16.msra.mxu0 %v1925
          %2075 = vmatpush.bf16.msra.mxu0 %v1924
          %2076 = vmatpush.bf16.msra.mxu0 %v1923
          %2077 = vmatpush.bf16.msra.mxu0 %v1922
          %2078 = vmatpush.bf16.msra.mxu0 %v1921
          %2079 = vmatpush.bf16.msra.mxu0 %v1920
          %2080 = vmatmul.bf16.gmra.mxu0 %v1496
          %v2081 = vpop.f32.mrf.mxu0
          %v2082 = vadd.f32 %v2068, %v2081
          %v2083 = vpop.f32.mrf.mxu0
          %v2084 = vadd.f32 %v2070, %v2083
          %2085 = vdwg.mxu0
          %2086 = vmatpush.bf16.msra.mxu0 %v1935
          %2087 = vmatpush.bf16.msra.mxu0 %v1934
          %2088 = vmatpush.bf16.msra.mxu0 %v1933
          %2089 = vmatpush.bf16.msra.mxu0 %v1932
          %2090 = vmatpush.bf16.msra.mxu0 %v1931
          %2091 = vmatpush.bf16.msra.mxu0 %v1930
          %2092 = vmatpush.bf16.msra.mxu0 %v1929
          %2093 = vmatpush.bf16.msra.mxu0 %v1928
          %2094 = vmatmul.bf16.gmra.mxu0 %v1497
          %v2095 = vpop.f32.mrf.mxu0
          %v2096 = vadd.f32 %v2082, %v2095
          %v2097 = vpop.f32.mrf.mxu0
          %v2098 = vadd.f32 %v2084, %v2097
          %2099 = vdwg.mxu0
          %2100 = vmatpush.bf16.msra.mxu0 %v1943
          %2101 = vmatpush.bf16.msra.mxu0 %v1942
          %2102 = vmatpush.bf16.msra.mxu0 %v1941
          %2103 = vmatpush.bf16.msra.mxu0 %v1940
          %2104 = vmatpush.bf16.msra.mxu0 %v1939
          %2105 = vmatpush.bf16.msra.mxu0 %v1938
          %2106 = vmatpush.bf16.msra.mxu0 %v1937
          %2107 = vmatpush.bf16.msra.mxu0 %v1936
          %2108 = vmatmul.bf16.gmra.mxu0 %v1498
          %v2109 = vpop.f32.mrf.mxu0
          %v2110 = vadd.f32 %v2096, %v2109
          %v2111 = vpop.f32.mrf.mxu0
          %v2112 = vadd.f32 %v2098, %v2111
          %2113 = vdwg.mxu0
          %2114 = vmatpush.bf16.msra.mxu0 %v1951
          %2115 = vmatpush.bf16.msra.mxu0 %v1950
          %2116 = vmatpush.bf16.msra.mxu0 %v1949
          %2117 = vmatpush.bf16.msra.mxu0 %v1948
          %2118 = vmatpush.bf16.msra.mxu0 %v1947
          %2119 = vmatpush.bf16.msra.mxu0 %v1946
          %2120 = vmatpush.bf16.msra.mxu0 %v1945
          %2121 = vmatpush.bf16.msra.mxu0 %v1944
          %2122 = vmatmul.bf16.gmra.mxu0 %v1499
          %v2123 = vpop.f32.mrf.mxu0
          %v2124 = vadd.f32 %v2110, %v2123
          %v2125 = vpop.f32.mrf.mxu0
          %v2126 = vadd.f32 %v2112, %v2125
          %2127 = vdwg.mxu0
          %2128 = vst [vmem:[%s354] sm:$0xff] %v2124
          %2129 = vst [vmem:[%s354 + $0x8] sm:$0xff] %v2126
        $region68: #{unispeech_classification_head.1} parent=39 // pred_fallthru
          _
        %s2130 = smul.u32 2, %s27
        %p2131 = scmp.lt.s32.totalorder %s2130, 1
        %s2132 = scalar_select %p2131, %s2130, 1
        %s2133 = smul.addr %s2132, 8
        %s2134 = scalar_lea.vmem %s5, %s2133
        // Predicated region
        $region69: #{unispeech_classification_head.1} parent=39 // pred_check
          %p2135 = pneg %p170
        $region70: #{unispeech_classification_head.1} parent=39 // pred_check_branch
          %2137 = sbr.rel (%p2135) target = $region72
        $region71: #{unispeech_classification_head.1} parent=39 // pred_region
          %s2138 = smul.u32 2, %s27
        $region72: #{unispeech_classification_head.1} parent=39 // pred_fallthru
          _
        // Predicated region
        $region73: #{unispeech_classification_head.1} parent=39 // pred_check
          %p2139 = pneg %p170
        $region74: #{unispeech_classification_head.1} parent=39 // pred_check_branch
          %2141 = sbr.rel (%p2139) target = $region76
        $region75: #{unispeech_classification_head.1} parent=39 // pred_region
          %s2142 = smul.u32 2, %s27
          %p2143 = scmp.lt.s32.totalorder %s2142, 1
          %s2144 = scalar_select %p2143, %s2142, 1
          %s2145 = smul.addr %s2144, 8
          %s2146 = scalar_lea.vmem %s5, %s2145
        $region76: #{unispeech_classification_head.1} parent=39 // pred_fallthru
          _
      $region40: #{unispeech_classification_head.1} parent=5 // pred_fallthru
        _
      %p2147 = scmp.le.s32.totalorder 2, %s18
      // Predicated region
      $region77: #{unispeech_classification_head.1} parent=5 // pred_check
        %p2148 = pneg %p2147
      $region78: #{unispeech_classification_head.1} parent=5 // pred_check_branch
        %2150 = sbr.rel (%p2148) target = $region80
      $region79: #{unispeech_classification_head.1} parent=5 // pred_region
        %s2151 = ssub.s32 %s18, 2
      $region80: #{unispeech_classification_head.1} parent=5 // pred_fallthru
        _
    $region6: #{unispeech_classification_head.1} parent=1 // loop_footer
      %s22 = sadd.s32 1, %s18
    $region7: #{unispeech_classification_head.1} parent=1 // loop_footer_branch
      %17 = sbr.rel target = $region3
    $region8: #{unispeech_classification_head.1} parent=1 // loop_exit
      _
    %2152 = vsyncpa [#allocation4], 1
    %s2153 = scalar_lea.sflag [#allocation4], 1
    %2154 = vsyncpa %s2153, 1
    %2155 = vsyncpa [#allocation6], 1
    %s2156 = scalar_lea.sflag [#allocation6], 1
    %2157 = vsyncpa %s2156, 1
    %2158 = vsyncpa [#allocation9], 1

</llo_original>
